<compile_context>
chip_gen: v7x
topology: tpu7x:2x2x1
jax: 0.10.0
libtpu: 0.0.40
codegen_flags: <defaults>
</compile_context>

<pallas_src>
import functools
import math

import jax
import jax.numpy as jnp
from jax.experimental import pallas as pl
from jax.experimental.pallas import tpu as pltpu


_VMEM_LIMIT = 32 * 1024 * 1024   # explicit scoped-VMEM budget; safe on v5e/v6e/v7x


def _pick_hw_tile(hw, bytes_per_pixel, budget=4 << 20):
    """Largest 128-multiple divisor of hw whose block fits the per-block budget."""
    candidates = [t for t in (4096, 2048, 1024, 512, 256, 128) if hw % t == 0]
    for t in candidates:
        if t * bytes_per_pixel <= budget:
            return t
    if candidates:
        return candidates[-1]
    return hw            # small / odd spatial extent: one tile per image


# ----------------------------------------------------------------------------
# Pallas kernels
# ----------------------------------------------------------------------------
def _encode_level_kernel(x_ref, w_ref, cb_ref, drop_ref, gum_ref,
                         deq_ref, res_ref, code_ref, logit_ref,
                         *, m, k, d, inv_scale):
    """conv1x1 -> multi-codebook quantize -> dequantize -> residual (one level).

    Block layouts (channels on sublanes, pixels on lanes):
      x_ref     (1, 32, thw)    level input, NCHW slab
      w_ref     (32, 32)        conv1x1 weight [C_out, C_in]
      cb_ref    (m, k, d)       codebook (resident across the whole grid)
      drop_ref  (1, m, k, thw)  uniform[0,1) for _randomDrop
      gum_ref   (1, m, k, thw)  standard Gumbel noise
      deq_ref   (1, 32, thw)    dequantized sample (NCHW slab)
      res_ref   (1, 32, thw)    residual z - deq for the next level
      code_ref  (1, m, thw)     argmax code (lane-dense in pixels)
      logit_ref (1, m, thw, k)  post-drop logits (module output layout)
    """
    x = x_ref[0]                                                        # (32, thw)
    w = w_ref[...]                                                      # (32, 32)
    cb = cb_ref[...]                                                    # (m, k, d)

    # latentStageEncoder tail conv1x1(32,32,bias=False): z[o,p] = sum_i W[o,i] x[i,p]
    z = jax.lax.dot_general(w, x, (((1,), (0,)), ((), ())),
                            preferred_element_type=jnp.float32)          # (32, thw)

    thw = z.shape[-1]
    zg = z.reshape(m, d, thw)                                            # codebook groups

    # ||z - c||^2 = z^2 + c^2 - 2 c.z   (batched over groups -> MXU)
    inter = jax.lax.dot_general(cb, zg, (((2,), (1,)), ((0,), (0,))),
                                preferred_element_type=jnp.float32)      # (m, k, thw)
    z2 = jnp.sum(zg * zg, axis=1, keepdims=True)                         # (m, 1, thw)
    c2 = jnp.sum(cb * cb, axis=-1, keepdims=True)                        # (m, k, 1)
    # logit = -distance / sqrt(k); temperature LowerBound(1.0) == 1.0 exactly.
    logit = -(z2 + c2 - 2.0 * inter) * inv_scale                         # (m, k, thw)

    # _randomDrop with freqEMA == 0.5:  rand**1 < 0.5  ->  logit += -1e9
    logit = jnp.where(drop_ref[0] < 0.5, logit - 1e9, logit)
    # The module returns the post-drop logits (in-place mutation in PyTorch);
    # the k-last layout the module expects is produced by a minor-dims transpose (XLU).
    logit_ref[0] = jnp.swapaxes(logit, 1, 2)                             # (m, thw, k)

    kiota = jax.lax.broadcasted_iota(jnp.int32, (m, k, thw), 1)

    # hard Gumbel-softmax, tau=1: forward value is the one-hot of argmax(logit + g)
    pert = logit + gum_ref[0]
    pmax = jnp.max(pert, axis=1, keepdims=True)
    sidx = jnp.min(jnp.where(pert == pmax, kiota, k), axis=1, keepdims=True)
    sample = (kiota == sidx).astype(jnp.float32)                         # (m, k, thw)

    # code = argmax(logit) over the codebook axis (first max index), lane-dense
    lmax = jnp.max(logit, axis=1, keepdims=True)
    code_ref[0] = jnp.min(jnp.where(logit == lmax, kiota, k), axis=1)    # (m, thw)

    # _multiCodebookDeQuantization: deq[g,j,p] = sum_c cb[g,c,j] * sample[g,c,p]
    deq_g = jax.lax.dot_general(cb, sample, (((1,), (1,)), ((0,), (0,))),
                                preferred_element_type=jnp.float32)      # (m, d, thw)
    deq = deq_g.reshape(m * d, thw)                                      # NCHW slab
    deq_ref[0] = deq
    res_ref[0] = z - deq                                                 # next-level input


def _restore_kernel(q_ref, w_ref, o_ref):
    # Deepest level: sideHead is None -> xHat = deq; restoreHead leading conv1x1.
    o_ref[0] = jax.lax.dot_general(w_ref[...], q_ref[0], (((1,), (0,)), ((), ())),
                                   preferred_element_type=jnp.float32)


def _restore_add_kernel(q_ref, f_ref, w_ref, o_ref):
    # xHat = deq + sideHead(formerLevel) (sideHead == Identity); then conv1x1.
    xhat = q_ref[0] + f_ref[0]
    o_ref[0] = jax.lax.dot_general(w_ref[...], xhat, (((1,), (0,)), ((), ())),
                                   preferred_element_type=jnp.float32)


# ----------------------------------------------------------------------------
# Wrappers
# ----------------------------------------------------------------------------
def encode_level(x_flat, enc_w, codebook, key_drop, key_gumbel):
    """One fused encoder level. x_flat: (N, 32, H*W) NCHW slab."""
    n, c, hw = x_flat.shape
    m, k, d = codebook.shape
    assert c == m * d
    thw = _pick_hw_tile(hw, bytes_per_pixel=4 * (3 * c + m + 12 * m * k))
    grid = (n, hw // thw)

    u_drop = jax.random.uniform(key_drop, (n, m, k, hw), jnp.float32)
    gumbel = jax.random.gumbel(key_gumbel, (n, m, k, hw), jnp.float32)

    kernel = functools.partial(_encode_level_kernel, m=m, k=k, d=d,
                               inv_scale=1.0 / math.sqrt(k))

    deq, res, code, logit = pl.pallas_call(
        kernel,
        grid=grid,
        in_specs=[
            pl.BlockSpec((1, c, thw), lambda ni, hi: (ni, 0, hi)),
            pl.BlockSpec((c, c), lambda ni, hi: (0, 0)),
            pl.BlockSpec((m, k, d), lambda ni, hi: (0, 0, 0)),      # resident codebook
            pl.BlockSpec((1, m, k, thw), lambda ni, hi: (ni, 0, 0, hi)),
            pl.BlockSpec((1, m, k, thw), lambda ni, hi: (ni, 0, 0, hi)),
        ],
        out_specs=[
            pl.BlockSpec((1, c, thw), lambda ni, hi: (ni, 0, hi)),      # dequantized
            pl.BlockSpec((1, c, thw), lambda ni, hi: (ni, 0, hi)),      # residual
            pl.BlockSpec((1, m, thw), lambda ni, hi: (ni, 0, hi)),      # code (lane-dense)
            pl.BlockSpec((1, m, thw, k), lambda ni, hi: (ni, 0, hi, 0)),  # logit
        ],
        out_shape=(
            jax.ShapeDtypeStruct((n, c, hw), jnp.float32),
            jax.ShapeDtypeStruct((n, c, hw), jnp.float32),
            jax.ShapeDtypeStruct((n, m, hw), jnp.int32),
            jax.ShapeDtypeStruct((n, m, hw, k), jnp.float32),
        ),
        compiler_params=pltpu.CompilerParams(
            dimension_semantics=("parallel", "parallel"),
            vmem_limit_bytes=_VMEM_LIMIT),
    )(x_flat, enc_w, codebook, u_drop, gumbel)
    return deq, res, code, logit


def restore_level(deq_flat, former_flat, dec_w):
    """One fused decoder level: (deq [+ former]) -> conv1x1(32,32,bias=False)."""
    n, c, hw = deq_flat.shape
    thw = _pick_hw_tile(hw, bytes_per_pixel=4 * 4 * c)
    grid = (n, hw // thw)
    xspec = pl.BlockSpec((1, c, thw), lambda ni, hi: (ni, 0, hi))
    wspec = pl.BlockSpec((c, c), lambda ni, hi: (0, 0))
    common = dict(
        grid=grid,
        out_specs=pl.BlockSpec((1, c, thw), lambda ni, hi: (ni, 0, hi)),
        out_shape=jax.ShapeDtypeStruct((n, c, hw), jnp.float32),
        compiler_params=pltpu.CompilerParams(
            dimension_semantics=("parallel", "parallel"),
            vmem_limit_bytes=_VMEM_LIMIT),
    )
    if former_flat is None:
        return pl.pallas_call(_restore_kernel, in_specs=[xspec, wspec],
                              **common)(deq_flat, dec_w)
    return pl.pallas_call(_restore_add_kernel, in_specs=[xspec, xspec, wspec],
                          **common)(deq_flat, former_flat, dec_w)


def neon_quantizer_forward(x, levels, key):
    """Forward of NeonQuantizer: returns (formerLevel, codes, logits)."""
    n, c, h, w = x.shape
    hw = h * w
    x = x.reshape(n, c, hw)                      # NCHW slab (free reshape, no copy)

    deqs, codes, logits = [], [], []
    for p in levels:
        key, kd, kg = jax.random.split(key, 3)
        deq, res, code, logit = encode_level(x, p["enc_w"], p["codebook"], kd, kg)
        m, k, _ = p["codebook"].shape
        deqs.append(deq)
        codes.append(code.reshape(n, m, h, w))
        logits.append(logit.reshape(n, m, h, w, k))
        x = res                                   # residual fed to the next level

    # decoder pass (reverse order; deepest level has sideHead=None).  The decoder
    # dequantizes the same Gumbel sample, so the encoder's deq is reused directly.
    former = None
    for p, deq in zip(levels[::-1], deqs[::-1]):
        former = restore_level(deq, former, p["dec_w"])

    # TODO(synk): self._entropyCoder(oneHots) frequency-statistics update omitted.
    return former.reshape(n, c, h, w), codes, logits


# ----------------------------------------------------------------------------
# Deterministic parameter construction + smoke test
# ----------------------------------------------------------------------------
def build_params(m_list, k_list, key):
    levels = []
    for mi, ki in zip(m_list, k_list):
        key, k1, k2, k3 = jax.random.split(key, 4)
        d = 32 // mi
        std = math.sqrt(2.0 / (5 * 32 / float(mi)))            # as in the module __init__
        levels.append(dict(
            codebook=std * jax.random.normal(k1, (mi, ki, d), jnp.float32),
            enc_w=0.1 * jax.random.normal(k2, (32, 32), jnp.float32),   # conv1x1 [C_out, C_in]
            dec_w=0.1 * jax.random.normal(k3, (32, 32), jnp.float32),
        ))
    return levels


if __name__ == "__main__":
    root = jax.random.PRNGKey(0)
    root, kx = jax.random.split(root)

    m_list = [2, 4]
    k_list = [16, 8]
    levels = build_params(m_list, k_list, root)

    # x: NCHW [N=2, C=32, H=8, W=8]  (channel count 32 is required by the module)
    x = jax.random.normal(kx, (2, 32, 8, 8), jnp.float32)

    former, codes, logits = neon_quantizer_forward(x, levels, jax.random.PRNGKey(1234))

    jax.block_until_ready(former)
    for arr in codes + logits:
        jax.block_until_ready(arr)

    assert former.shape == (2, 32, 8, 8)
    assert codes[0].shape == (2, 2, 8, 8) and codes[1].shape == (2, 4, 8, 8)
    assert logits[0].shape == (2, 2, 8, 8, 16) and logits[1].shape == (2, 4, 8, 8, 8)
    assert codes[0].dtype == jnp.int32

    print("KERNEL_OK")
</pallas_src>

<mosaic_0001>
module attributes {stable_mosaic.version = 11 : i64} {
  func.func @_encode_level_kernel(%arg0: i32, %arg1: i32, %arg2: memref<1x32x64xf32, #tpu.memory_space<vmem>>, %arg3: memref<32x32xf32, #tpu.memory_space<vmem>>, %arg4: memref<2x16x16xf32, #tpu.memory_space<vmem>>, %arg5: memref<1x2x16x64xf32, #tpu.memory_space<vmem>>, %arg6: memref<1x2x16x64xf32, #tpu.memory_space<vmem>>, %arg7: memref<1x32x64xf32, #tpu.memory_space<vmem>>, %arg8: memref<1x32x64xf32, #tpu.memory_space<vmem>>, %arg9: memref<1x2x64xi32, #tpu.memory_space<vmem>>, %arg10: memref<1x2x64x16xf32, #tpu.memory_space<vmem>>) attributes {dimension_semantics = [#tpu.dimension_semantics<parallel>, #tpu.dimension_semantics<parallel>], iteration_bounds = array<i64: 2, 1>, scalar_prefetch = 0 : i64, scratch_operands = 0 : i64, tpu.core_type = #tpu.core_type<tc>, window_params = [{transform_indices = @transform_0, window_bounds = array<i64: 1, 32, 64>}, {pipeline_mode = #tpu.pipeline_mode<synchronous>, transform_indices = @transform_1, window_bounds = array<i64: 32, 32>}, {pipeline_mode = #tpu.pipeline_mode<synchronous>, transform_indices = @transform_2, window_bounds = array<i64: 2, 16, 16>}, {transform_indices = @transform_3, window_bounds = array<i64: 1, 2, 16, 64>}, {transform_indices = @transform_4, window_bounds = array<i64: 1, 2, 16, 64>}, {transform_indices = @transform_5, window_bounds = array<i64: 1, 32, 64>}, {transform_indices = @transform_6, window_bounds = array<i64: 1, 32, 64>}, {transform_indices = @transform_7, window_bounds = array<i64: 1, 2, 64>}, {transform_indices = @transform_8, window_bounds = array<i64: 1, 2, 64, 16>}]} {
    %c0 = arith.constant 0 : index
    %c0_0 = arith.constant 0 : index
    %c0_1 = arith.constant 0 : index
    %0 = vector.load %arg2[%c0, %c0_0, %c0_1] : memref<1x32x64xf32, #tpu.memory_space<vmem>>, vector<1x32x64xf32>
    %1 = vector.shape_cast %0 : vector<1x32x64xf32> to vector<32x64xf32>
    %c0_2 = arith.constant 0 : index
    %c0_3 = arith.constant 0 : index
    %2 = vector.load %arg3[%c0_2, %c0_3] : memref<32x32xf32, #tpu.memory_space<vmem>>, vector<32x32xf32>
    %c0_4 = arith.constant 0 : index
    %c0_5 = arith.constant 0 : index
    %c0_6 = arith.constant 0 : index
    %3 = vector.load %arg4[%c0_4, %c0_5, %c0_6] : memref<2x16x16xf32, #tpu.memory_space<vmem>>, vector<2x16x16xf32>
    %cst = arith.constant dense<0.000000e+00> : vector<32x64xf32>
    %4 = tpu.matmul %2, %1, %cst {dimension_numbers = #tpu.dot_dimension_numbers<[1], [0], [0], [1], [0, 0, 1, 1], [], []>} : vector<32x32xf32>, vector<32x64xf32>, vector<32x64xf32> -> vector<32x64xf32>
    %5 = vector.shape_cast %4 : vector<32x64xf32> to vector<2x16x64xf32>
    %cst_7 = arith.constant dense<0.000000e+00> : vector<2x16x64xf32>
    %6 = tpu.matmul %3, %5, %cst_7 {dimension_numbers = #tpu.dot_dimension_numbers<[2], [1], [1], [2], [0, 0, 0, 1, 1, 2], [0], [0]>} : vector<2x16x16xf32>, vector<2x16x64xf32>, vector<2x16x64xf32> -> vector<2x16x64xf32>
    %7 = arith.mulf %5, %5 : vector<2x16x64xf32>
    %cst_8 = arith.constant dense<0.000000e+00> : vector<2x64xf32>
    %8 = vector.multi_reduction <add>, %7, %cst_8 [1] : vector<2x16x64xf32> to vector<2x64xf32>
    %9 = vector.shape_cast %8 : vector<2x64xf32> to vector<2x1x64xf32>
    %10 = arith.mulf %3, %3 : vector<2x16x16xf32>
    %cst_9 = arith.constant dense<0.000000e+00> : vector<2x16xf32>
    %11 = vector.multi_reduction <add>, %10, %cst_9 [2] : vector<2x16x16xf32> to vector<2x16xf32>
    %12 = vector.shape_cast %11 : vector<2x16xf32> to vector<2x16x1xf32>
    %13 = vector.broadcast %9 : vector<2x1x64xf32> to vector<2x16x64xf32>
    %14 = vector.broadcast %12 : vector<2x16x1xf32> to vector<2x16x64xf32>
    %15 = arith.addf %13, %14 : vector<2x16x64xf32>
    %cst_10 = arith.constant 2.000000e+00 : f32
    %16 = vector.broadcast %cst_10 : f32 to vector<2x16x64xf32>
    %17 = arith.mulf %16, %6 : vector<2x16x64xf32>
    %18 = arith.subf %15, %17 : vector<2x16x64xf32>
    %cst_11 = arith.constant 0.000000e+00 : f32
    %19 = vector.broadcast %cst_11 : f32 to vector<2x16x64xf32>
    %20 = arith.subf %19, %18 : vector<2x16x64xf32>
    %cst_12 = arith.constant 2.500000e-01 : f32
    %21 = vector.broadcast %cst_12 : f32 to vector<2x16x64xf32>
    %22 = arith.mulf %20, %21 : vector<2x16x64xf32>
    %c0_13 = arith.constant 0 : index
    %c0_14 = arith.constant 0 : index
    %c0_15 = arith.constant 0 : index
    %c0_16 = arith.constant 0 : index
    %23 = vector.load %arg5[%c0_13, %c0_14, %c0_15, %c0_16] : memref<1x2x16x64xf32, #tpu.memory_space<vmem>>, vector<1x2x16x64xf32>
    %24 = vector.shape_cast %23 : vector<1x2x16x64xf32> to vector<2x16x64xf32>
    %cst_17 = arith.constant 5.000000e-01 : f32
    %25 = vector.broadcast %cst_17 : f32 to vector<2x16x64xf32>
    %26 = arith.cmpf olt, %24, %25 : vector<2x16x64xf32>
    %cst_18 = arith.constant 1.000000e+09 : f32
    %27 = vector.broadcast %cst_18 : f32 to vector<2x16x64xf32>
    %28 = arith.subf %22, %27 : vector<2x16x64xf32>
    %29 = arith.select %26, %28, %22 : vector<2x16x64xi1>, vector<2x16x64xf32>
    %30 = tpu.transpose %29, [0, 2, 1] : vector<2x16x64xf32> -> vector<2x64x16xf32>
    %c0_19 = arith.constant 0 : index
    %c0_20 = arith.constant 0 : index
    %c0_21 = arith.constant 0 : index
    %c0_22 = arith.constant 0 : index
    %31 = vector.load %arg10[%c0_19, %c0_20, %c0_21, %c0_22] : memref<1x2x64x16xf32, #tpu.memory_space<vmem>>, vector<1x2x64x16xf32>
    %32 = vector.shape_cast %31 : vector<1x2x64x16xf32> to vector<2x64x16xf32>
    %33 = vector.shape_cast %30 : vector<2x64x16xf32> to vector<1x2x64x16xf32>
    tpu.vector_store %arg10[%c0_19, %c0_20, %c0_21, %c0_22], %33 {strides = array<i32>} : memref<1x2x64x16xf32, #tpu.memory_space<vmem>>, vector<1x2x64x16xf32>,
    %34 = tpu.iota {dimensions = array<i32: 1>} : vector<2x16x64xi32>
    %c0_23 = arith.constant 0 : index
    %c0_24 = arith.constant 0 : index
    %c0_25 = arith.constant 0 : index
    %c0_26 = arith.constant 0 : index
    %35 = vector.load %arg6[%c0_23, %c0_24, %c0_25, %c0_26] : memref<1x2x16x64xf32, #tpu.memory_space<vmem>>, vector<1x2x16x64xf32>
    %36 = vector.shape_cast %35 : vector<1x2x16x64xf32> to vector<2x16x64xf32>
    %37 = arith.addf %29, %36 : vector<2x16x64xf32>
    %cst_27 = arith.constant dense<0xFF800000> : vector<2x64xf32>
    %38 = vector.multi_reduction <maximumf>, %37, %cst_27 [1] : vector<2x16x64xf32> to vector<2x64xf32>
    %39 = vector.shape_cast %38 : vector<2x64xf32> to vector<2x1x64xf32>
    %40 = vector.broadcast %39 : vector<2x1x64xf32> to vector<2x16x64xf32>
    %41 = arith.cmpf oeq, %37, %40 : vector<2x16x64xf32>
    %c16_i32 = arith.constant 16 : i32
    %42 = vector.broadcast %c16_i32 : i32 to vector<2x16x64xi32>
    %43 = arith.select %41, %34, %42 : vector<2x16x64xi1>, vector<2x16x64xi32>
    %cst_28 = arith.constant dense<2147483647> : vector<2x64xi32>
    %44 = vector.multi_reduction <minsi>, %43, %cst_28 [1] : vector<2x16x64xi32> to vector<2x64xi32>
    %45 = vector.shape_cast %44 : vector<2x64xi32> to vector<2x1x64xi32>
    %46 = vector.broadcast %45 : vector<2x1x64xi32> to vector<2x16x64xi32>
    %47 = arith.cmpi eq, %34, %46 : vector<2x16x64xi32>
    %48 = arith.extui %47 : vector<2x16x64xi1> to vector<2x16x64xi32>
    %49 = arith.sitofp %48 : vector<2x16x64xi32> to vector<2x16x64xf32>
    %cst_29 = arith.constant dense<0xFF800000> : vector<2x64xf32>
    %50 = vector.multi_reduction <maximumf>, %29, %cst_29 [1] : vector<2x16x64xf32> to vector<2x64xf32>
    %51 = vector.shape_cast %50 : vector<2x64xf32> to vector<2x1x64xf32>
    %52 = vector.broadcast %51 : vector<2x1x64xf32> to vector<2x16x64xf32>
    %53 = arith.cmpf oeq, %29, %52 : vector<2x16x64xf32>
    %c16_i32_30 = arith.constant 16 : i32
    %54 = vector.broadcast %c16_i32_30 : i32 to vector<2x16x64xi32>
    %55 = arith.select %53, %34, %54 : vector<2x16x64xi1>, vector<2x16x64xi32>
    %cst_31 = arith.constant dense<2147483647> : vector<2x64xi32>
    %56 = vector.multi_reduction <minsi>, %55, %cst_31 [1] : vector<2x16x64xi32> to vector<2x64xi32>
    %c0_32 = arith.constant 0 : index
    %c0_33 = arith.constant 0 : index
    %c0_34 = arith.constant 0 : index
    %57 = vector.load %arg9[%c0_32, %c0_33, %c0_34] : memref<1x2x64xi32, #tpu.memory_space<vmem>>, vector<1x2x64xi32>
    %58 = vector.shape_cast %57 : vector<1x2x64xi32> to vector<2x64xi32>
    %59 = vector.shape_cast %56 : vector<2x64xi32> to vector<1x2x64xi32>
    tpu.vector_store %arg9[%c0_32, %c0_33, %c0_34], %59 {strides = array<i32>} : memref<1x2x64xi32, #tpu.memory_space<vmem>>, vector<1x2x64xi32>,
    %cst_35 = arith.constant dense<0.000000e+00> : vector<2x16x64xf32>
    %60 = tpu.matmul %3, %49, %cst_35 {dimension_numbers = #tpu.dot_dimension_numbers<[1], [1], [2], [2], [0, 0, 0, 2, 1, 2], [0], [0]>} : vector<2x16x16xf32>, vector<2x16x64xf32>, vector<2x16x64xf32> -> vector<2x16x64xf32>
    %61 = vector.shape_cast %60 : vector<2x16x64xf32> to vector<32x64xf32>
    %c0_36 = arith.constant 0 : index
    %c0_37 = arith.constant 0 : index
    %c0_38 = arith.constant 0 : index
    %62 = vector.load %arg7[%c0_36, %c0_37, %c0_38] : memref<1x32x64xf32, #tpu.memory_space<vmem>>, vector<1x32x64xf32>
    %63 = vector.shape_cast %62 : vector<1x32x64xf32> to vector<32x64xf32>
    %64 = vector.shape_cast %61 : vector<32x64xf32> to vector<1x32x64xf32>
    tpu.vector_store %arg7[%c0_36, %c0_37, %c0_38], %64 {strides = array<i32>} : memref<1x32x64xf32, #tpu.memory_space<vmem>>, vector<1x32x64xf32>,
    %65 = arith.subf %4, %61 : vector<32x64xf32>
    %c0_39 = arith.constant 0 : index
    %c0_40 = arith.constant 0 : index
    %c0_41 = arith.constant 0 : index
    %66 = vector.load %arg8[%c0_39, %c0_40, %c0_41] : memref<1x32x64xf32, #tpu.memory_space<vmem>>, vector<1x32x64xf32>
    %67 = vector.shape_cast %66 : vector<1x32x64xf32> to vector<32x64xf32>
    %68 = vector.shape_cast %65 : vector<32x64xf32> to vector<1x32x64xf32>
    tpu.vector_store %arg8[%c0_39, %c0_40, %c0_41], %68 {strides = array<i32>} : memref<1x32x64xf32, #tpu.memory_space<vmem>>, vector<1x32x64xf32>,
    return
  }
  func.func @transform_0(%arg0: i32, %arg1: i32) -> (i32, i32, i32) {
    %c0_i32 = arith.constant 0 : i32
    %c0_i32_0 = arith.constant 0 : i32
    return %arg0, %c0_i32, %arg1 : i32, i32, i32
  }
  func.func @transform_1(%arg0: i32, %arg1: i32) -> (i32, i32) {
    %c0_i32 = arith.constant 0 : i32
    %c0_i32_0 = arith.constant 0 : i32
    %c0_i32_1 = arith.constant 0 : i32
    return %c0_i32, %c0_i32_0 : i32, i32
  }
  func.func @transform_2(%arg0: i32, %arg1: i32) -> (i32, i32, i32) {
    %c0_i32 = arith.constant 0 : i32
    %c0_i32_0 = arith.constant 0 : i32
    %c0_i32_1 = arith.constant 0 : i32
    %c0_i32_2 = arith.constant 0 : i32
    return %c0_i32, %c0_i32_0, %c0_i32_1 : i32, i32, i32
  }
  func.func @transform_3(%arg0: i32, %arg1: i32) -> (i32, i32, i32, i32) {
    %c0_i32 = arith.constant 0 : i32
    %c0_i32_0 = arith.constant 0 : i32
    %c0_i32_1 = arith.constant 0 : i32
    return %arg0, %c0_i32, %c0_i32_0, %arg1 : i32, i32, i32, i32
  }
  func.func @transform_4(%arg0: i32, %arg1: i32) -> (i32, i32, i32, i32) {
    %c0_i32 = arith.constant 0 : i32
    %c0_i32_0 = arith.constant 0 : i32
    %c0_i32_1 = arith.constant 0 : i32
    return %arg0, %c0_i32, %c0_i32_0, %arg1 : i32, i32, i32, i32
  }
  func.func @transform_5(%arg0: i32, %arg1: i32) -> (i32, i32, i32) {
    %c0_i32 = arith.constant 0 : i32
    %c0_i32_0 = arith.constant 0 : i32
    return %arg0, %c0_i32, %arg1 : i32, i32, i32
  }
  func.func @transform_6(%arg0: i32, %arg1: i32) -> (i32, i32, i32) {
    %c0_i32 = arith.constant 0 : i32
    %c0_i32_0 = arith.constant 0 : i32
    return %arg0, %c0_i32, %arg1 : i32, i32, i32
  }
  func.func @transform_7(%arg0: i32, %arg1: i32) -> (i32, i32, i32) {
    %c0_i32 = arith.constant 0 : i32
    %c0_i32_0 = arith.constant 0 : i32
    return %arg0, %c0_i32, %arg1 : i32, i32, i32
  }
  func.func @transform_8(%arg0: i32, %arg1: i32) -> (i32, i32, i32, i32) {
    %c0_i32 = arith.constant 0 : i32
    %c0_i32_0 = arith.constant 0 : i32
    %c0_i32_1 = arith.constant 0 : i32
    return %arg0, %c0_i32, %arg1, %c0_i32_0 : i32, i32, i32, i32
  }
}

</mosaic_0001>

<llo_original>
// kernel: tpu_custom_call.1
$region0: #{tpu_custom_call.1}
  #allocation0 [shape = 'u32[]', space=smem, size = 0x4, offset = 0x4, fixed_abs, tag = 'smem constant byte address 0x4 - core index']
  #allocation1 [shape = 'u32[144,128]{1,0:T(1,128)}', space=vmem, size = 0x12000, scoped, tag = 'internal scratch']
  %s0 = inlined_call_operand.hbm [shape: f32[2,32,64], index: 0, kind: input, shape index: {}]
  %s1 = inlined_call_operand.hbm [shape: f32[32,32], index: 1, kind: input, shape index: {}]
  %s2 = inlined_call_operand.hbm [shape: f32[2,16,16], index: 2, kind: input, shape index: {}]
  %s3 = inlined_call_operand.hbm [shape: f32[2,2,16,64], index: 3, kind: input, shape index: {}]
  %s4 = inlined_call_operand.hbm [shape: f32[2,2,16,64], index: 4, kind: input, shape index: {}]
  %s5 = inlined_call_operand.hbm [shape: f32[2,32,64], index: 5, kind: output, shape index: {0}]
  %s6 = inlined_call_operand.hbm [shape: f32[2,32,64], index: 6, kind: output, shape index: {1}]
  %s7 = inlined_call_operand.hbm [shape: s32[2,2,64], index: 7, kind: output, shape index: {2}]
  %s8 = inlined_call_operand.vmem [shape: f32[2,2,64,16], index: 8, kind: output, shape index: {3}]
  %9 = xla_tuple %s5, %s6, %s7, %s8
  %s10 = sld [smem:[#allocation0]]
  $region97: #{tpu_custom_call.1} parent=0
    _
  %s12 = ssub.s32 1, %s10
  %s13 = scalar_select 0, %s12, %s10
  $region1: #{tpu_custom_call.1} parent=0
    #allocation2 [shape = 'u8[32768]{0}', space=vmem, size = 0x8000, scoped, tag = 'input window, operand 0']
    #allocation3 [shape = 's32[2]{0}', space=sflag, size = 0x8, scoped, tag = 'scoped memory for tpu_custom_call.1']
    #allocation4 [shape = 's32[2]{0}', space=sflag, size = 0x8, scoped, tag = 'scoped memory for tpu_custom_call.1']
    #allocation5 [shape = 'u8[16384]{0}', space=vmem, size = 0x4000, scoped, tag = 'input window, operand 1, single buffered']
    #allocation6 [shape = 's32[1]{0}', space=sflag, size = 0x4, scoped, tag = 'scoped memory for tpu_custom_call.1']
    #allocation7 [shape = 'u8[16384]{0}', space=vmem, size = 0x4000, scoped, tag = 'input window, operand 2, single buffered']
    #allocation8 [shape = 'u8[32768]{0}', space=vmem, size = 0x8000, scoped, tag = 'input window, operand 3']
    #allocation9 [shape = 's32[2]{0}', space=sflag, size = 0x8, scoped, tag = 'scoped memory for tpu_custom_call.1']
    #allocation10 [shape = 'u8[32768]{0}', space=vmem, size = 0x8000, scoped, tag = 'input window, operand 4']
    #allocation11 [shape = 'u8[32768]{0}', space=vmem, size = 0x8000, scoped, tag = 'output window, operand 0']
    #allocation12 [shape = 'u8[32768]{0}', space=vmem, size = 0x8000, scoped, tag = 'output window, operand 1']
    #allocation13 [shape = 's32[2]{0}', space=sflag, size = 0x8, scoped, tag = 'scoped memory for tpu_custom_call.1']
    #allocation14 [shape = 'u8[2048]{0}', space=vmem, size = 0x800, scoped, tag = 'output window, operand 2']
    %14 = vsyncpa [#allocation3], 0
    %s15 = scalar_lea.sflag [#allocation3], 1
    %16 = vsyncpa %s15, 0
    %17 = vsyncpa [#allocation6], 0
    %18 = vsyncpa [#allocation9], 0
    %s19 = scalar_lea.sflag [#allocation9], 1
    %20 = vsyncpa %s19, 0
    %21 = vsyncpa [#allocation4], 0
    %s22 = scalar_lea.sflag [#allocation4], 1
    %23 = vsyncpa %s22, 0
    %24 = vsyncpa [#allocation13], 0
    %s25 = scalar_lea.sflag [#allocation13], 1
    %26 = vsyncpa %s25, 0
    loop: start=0, step=1, limit=4
    $region2: #{tpu_custom_call.1} parent=1 // loop_pre_header
      _
    $region3: #{tpu_custom_call.1} parent=1 // loop_header
      %s28 = sphi 0, %s32
      %p29 = scmp.ge.s32.totalorder %s28, 4
      %s35 = sphi 0, %s47
      %s36 = sphi 0, %s43
      %s37 = sphi 0, %s35
      %s38 = sphi 0, %s36
      %s39 = sphi 0, %s37
      %s40 = sphi 0, %s38
      %s52 = sphi 0, %s54
      %s55 = sphi 0, %s52
      %s56 = sphi 0, %s55
      %s72 = sphi 0, %s56
      %s76 = sphi 0, %s76
      %s78 = sphi 0, %s76
      %s79 = sphi 0, %s78
      %s93 = sphi 0, %s79
      %s97 = sphi 0, %s97
      %s99 = sphi 0, %s97
      %s100 = sphi 0, %s99
      %s114 = sphi 0, %s100
      %s122 = sphi 0, %s124
      %s125 = sphi 0, %s122
      %s126 = sphi 0, %s125
      %s142 = sphi 0, %s126
      %s150 = sphi 0, %s152
      %s153 = sphi 0, %s150
      %s154 = sphi 0, %s153
      %s170 = sphi 0, %s154
      %s178 = sphi 0, %s180
      %s181 = sphi 0, %s178
      %s182 = sphi 0, %s181
      %s198 = sphi 0, %s182
      %s206 = sphi 0, %s208
      %s209 = sphi 0, %s206
      %s210 = sphi 0, %s209
      %s226 = sphi 0, %s210
      %s234 = sphi 0, %s236
      %s237 = sphi 0, %s234
      %s238 = sphi 0, %s237
      %s254 = sphi 0, %s238
      %s262 = sphi 0, %s264
      %s265 = sphi 0, %s262
      %s266 = sphi 0, %s265
      %s282 = sphi 0, %s266
    $region4: #{tpu_custom_call.1} parent=1 // loop_header_branch
      %31 = sbr.rel (%p29) target = $region8
    $region5: #{tpu_custom_call.1} parent=1 // loop_body
      %s33 = ssub.s32 %s28, 1
      %s34 = ssub.s32 %s28, 2
      %s41 = sadd.s32 1, %s36
      %p42 = scmp.ge.s32.totalorder %s41, 1
      %s43 = scalar_select %p42, 0, %s41
      %s44 = sadd.s32 1, %s35
      %s45 = scalar_select %p42, %s44, %s35
      %p46 = scmp.ge.s32.totalorder %s45, 2
      %s47 = scalar_select %p46, 0, %s45
      %s48 = ssub.s32 %s35, %s47
      %s49 = ssub.s32 %s36, %s43
      %s50 = sor.u32 %s48, %s49
      %p51 = scmp.eq.s32.totalorder %s50, 0
      %s53 = sadd.s32 %s52, 1
      %s54 = scalar_select %p51, %s52, %s53
      %p57 = pneg %p51
      %p58 = scmp.eq.s32.totalorder %s28, 1
      %p59 = por %p57, %p58
      %p60 = scmp.ne.s32.totalorder %s52, %s55
      %p61 = scmp.eq.s32.totalorder %s28, 0
      %p62 = por %p60, %p61
      %p63 = scmp.ne.s32.totalorder %s52, %s55
      %p64 = scmp.eq.s32.totalorder %s33, 1
      %p65 = por %p63, %p64
      %p66 = scmp.ne.s32.totalorder %s55, %s56
      %p67 = scmp.eq.s32.totalorder %s33, 0
      %p68 = por %p66, %p67
      %p69 = scmp.ne.s32.totalorder %s55, %s56
      %p70 = scmp.eq.s32.totalorder %s34, 1
      %p71 = por %p69, %p70
      %p73 = scmp.ne.s32.totalorder %s56, %s72
      %p74 = scmp.eq.s32.totalorder %s34, 0
      %p75 = por %p73, %p74
      %s77 = sadd.s32 %s76, 1
      %p80 = scmp.eq.s32.totalorder %s28, 1
      %p81 = scmp.ne.s32.totalorder %s76, %s78
      %p82 = scmp.eq.s32.totalorder %s28, 0
      %p83 = por %p81, %p82
      %p84 = scmp.ne.s32.totalorder %s76, %s78
      %p85 = scmp.eq.s32.totalorder %s33, 1
      %p86 = por %p84, %p85
      %p87 = scmp.ne.s32.totalorder %s78, %s79
      %p88 = scmp.eq.s32.totalorder %s33, 0
      %p89 = por %p87, %p88
      %p90 = scmp.ne.s32.totalorder %s78, %s79
      %p91 = scmp.eq.s32.totalorder %s34, 1
      %p92 = por %p90, %p91
      %p94 = scmp.ne.s32.totalorder %s79, %s93
      %p95 = scmp.eq.s32.totalorder %s34, 0
      %p96 = por %p94, %p95
      %s98 = sadd.s32 %s97, 1
      %p101 = scmp.eq.s32.totalorder %s28, 1
      %p102 = scmp.ne.s32.totalorder %s97, %s99
      %p103 = scmp.eq.s32.totalorder %s28, 0
      %p104 = por %p102, %p103
      %p105 = scmp.ne.s32.totalorder %s97, %s99
      %p106 = scmp.eq.s32.totalorder %s33, 1
      %p107 = por %p105, %p106
      %p108 = scmp.ne.s32.totalorder %s99, %s100
      %p109 = scmp.eq.s32.totalorder %s33, 0
      %p110 = por %p108, %p109
      %p111 = scmp.ne.s32.totalorder %s99, %s100
      %p112 = scmp.eq.s32.totalorder %s34, 1
      %p113 = por %p111, %p112
      %p115 = scmp.ne.s32.totalorder %s100, %s114
      %p116 = scmp.eq.s32.totalorder %s34, 0
      %p117 = por %p115, %p116
      %s118 = ssub.s32 %s35, %s47
      %s119 = ssub.s32 %s36, %s43
      %s120 = sor.u32 %s118, %s119
      %p121 = scmp.eq.s32.totalorder %s120, 0
      %s123 = sadd.s32 %s122, 1
      %s124 = scalar_select %p121, %s122, %s123
      %p127 = pneg %p121
      %p128 = scmp.eq.s32.totalorder %s28, 1
      %p129 = por %p127, %p128
      %p130 = scmp.ne.s32.totalorder %s122, %s125
      %p131 = scmp.eq.s32.totalorder %s28, 0
      %p132 = por %p130, %p131
      %p133 = scmp.ne.s32.totalorder %s122, %s125
      %p134 = scmp.eq.s32.totalorder %s33, 1
      %p135 = por %p133, %p134
      %p136 = scmp.ne.s32.totalorder %s125, %s126
      %p137 = scmp.eq.s32.totalorder %s33, 0
      %p138 = por %p136, %p137
      %p139 = scmp.ne.s32.totalorder %s125, %s126
      %p140 = scmp.eq.s32.totalorder %s34, 1
      %p141 = por %p139, %p140
      %p143 = scmp.ne.s32.totalorder %s126, %s142
      %p144 = scmp.eq.s32.totalorder %s34, 0
      %p145 = por %p143, %p144
      %s146 = ssub.s32 %s35, %s47
      %s147 = ssub.s32 %s36, %s43
      %s148 = sor.u32 %s146, %s147
      %p149 = scmp.eq.s32.totalorder %s148, 0
      %s151 = sadd.s32 %s150, 1
      %s152 = scalar_select %p149, %s150, %s151
      %p155 = pneg %p149
      %p156 = scmp.eq.s32.totalorder %s28, 1
      %p157 = por %p155, %p156
      %p158 = scmp.ne.s32.totalorder %s150, %s153
      %p159 = scmp.eq.s32.totalorder %s28, 0
      %p160 = por %p158, %p159
      %p161 = scmp.ne.s32.totalorder %s150, %s153
      %p162 = scmp.eq.s32.totalorder %s33, 1
      %p163 = por %p161, %p162
      %p164 = scmp.ne.s32.totalorder %s153, %s154
      %p165 = scmp.eq.s32.totalorder %s33, 0
      %p166 = por %p164, %p165
      %p167 = scmp.ne.s32.totalorder %s153, %s154
      %p168 = scmp.eq.s32.totalorder %s34, 1
      %p169 = por %p167, %p168
      %p171 = scmp.ne.s32.totalorder %s154, %s170
      %p172 = scmp.eq.s32.totalorder %s34, 0
      %p173 = por %p171, %p172
      %s174 = ssub.s32 %s35, %s47
      %s175 = ssub.s32 %s36, %s43
      %s176 = sor.u32 %s174, %s175
      %p177 = scmp.eq.s32.totalorder %s176, 0
      %s179 = sadd.s32 %s178, 1
      %s180 = scalar_select %p177, %s178, %s179
      %p183 = pneg %p177
      %p184 = scmp.eq.s32.totalorder %s28, 1
      %p185 = por %p183, %p184
      %p186 = scmp.ne.s32.totalorder %s178, %s181
      %p187 = scmp.eq.s32.totalorder %s28, 0
      %p188 = por %p186, %p187
      %p189 = scmp.ne.s32.totalorder %s178, %s181
      %p190 = scmp.eq.s32.totalorder %s33, 1
      %p191 = por %p189, %p190
      %p192 = scmp.ne.s32.totalorder %s181, %s182
      %p193 = scmp.eq.s32.totalorder %s33, 0
      %p194 = por %p192, %p193
      %p195 = scmp.ne.s32.totalorder %s181, %s182
      %p196 = scmp.eq.s32.totalorder %s34, 1
      %p197 = por %p195, %p196
      %p199 = scmp.ne.s32.totalorder %s182, %s198
      %p200 = scmp.eq.s32.totalorder %s34, 0
      %p201 = por %p199, %p200
      %s202 = ssub.s32 %s35, %s47
      %s203 = ssub.s32 %s36, %s43
      %s204 = sor.u32 %s202, %s203
      %p205 = scmp.eq.s32.totalorder %s204, 0
      %s207 = sadd.s32 %s206, 1
      %s208 = scalar_select %p205, %s206, %s207
      %p211 = pneg %p205
      %p212 = scmp.eq.s32.totalorder %s28, 1
      %p213 = por %p211, %p212
      %p214 = scmp.ne.s32.totalorder %s206, %s209
      %p215 = scmp.eq.s32.totalorder %s28, 0
      %p216 = por %p214, %p215
      %p217 = scmp.ne.s32.totalorder %s206, %s209
      %p218 = scmp.eq.s32.totalorder %s33, 1
      %p219 = por %p217, %p218
      %p220 = scmp.ne.s32.totalorder %s209, %s210
      %p221 = scmp.eq.s32.totalorder %s33, 0
      %p222 = por %p220, %p221
      %p223 = scmp.ne.s32.totalorder %s209, %s210
      %p224 = scmp.eq.s32.totalorder %s34, 1
      %p225 = por %p223, %p224
      %p227 = scmp.ne.s32.totalorder %s210, %s226
      %p228 = scmp.eq.s32.totalorder %s34, 0
      %p229 = por %p227, %p228
      %s230 = ssub.s32 %s35, %s47
      %s231 = ssub.s32 %s36, %s43
      %s232 = sor.u32 %s230, %s231
      %p233 = scmp.eq.s32.totalorder %s232, 0
      %s235 = sadd.s32 %s234, 1
      %s236 = scalar_select %p233, %s234, %s235
      %p239 = pneg %p233
      %p240 = scmp.eq.s32.totalorder %s28, 1
      %p241 = por %p239, %p240
      %p242 = scmp.ne.s32.totalorder %s234, %s237
      %p243 = scmp.eq.s32.totalorder %s28, 0
      %p244 = por %p242, %p243
      %p245 = scmp.ne.s32.totalorder %s234, %s237
      %p246 = scmp.eq.s32.totalorder %s33, 1
      %p247 = por %p245, %p246
      %p248 = scmp.ne.s32.totalorder %s237, %s238
      %p249 = scmp.eq.s32.totalorder %s33, 0
      %p250 = por %p248, %p249
      %p251 = scmp.ne.s32.totalorder %s237, %s238
      %p252 = scmp.eq.s32.totalorder %s34, 1
      %p253 = por %p251, %p252
      %p255 = scmp.ne.s32.totalorder %s238, %s254
      %p256 = scmp.eq.s32.totalorder %s34, 0
      %p257 = por %p255, %p256
      %s258 = ssub.s32 %s35, %s47
      %s259 = ssub.s32 %s36, %s43
      %s260 = sor.u32 %s258, %s259
      %p261 = scmp.eq.s32.totalorder %s260, 0
      %s263 = sadd.s32 %s262, 1
      %s264 = scalar_select %p261, %s262, %s263
      %p267 = pneg %p261
      %p268 = scmp.eq.s32.totalorder %s28, 1
      %p269 = por %p267, %p268
      %p270 = scmp.ne.s32.totalorder %s262, %s265
      %p271 = scmp.eq.s32.totalorder %s28, 0
      %p272 = por %p270, %p271
      %p273 = scmp.ne.s32.totalorder %s262, %s265
      %p274 = scmp.eq.s32.totalorder %s33, 1
      %p275 = por %p273, %p274
      %p276 = scmp.ne.s32.totalorder %s265, %s266
      %p277 = scmp.eq.s32.totalorder %s33, 0
      %p278 = por %p276, %p277
      %p279 = scmp.ne.s32.totalorder %s265, %s266
      %p280 = scmp.eq.s32.totalorder %s34, 1
      %p281 = por %p279, %p280
      %p283 = scmp.ne.s32.totalorder %s266, %s282
      %p284 = scmp.eq.s32.totalorder %s34, 0
      %p285 = por %p283, %p284
      %p286 = scmp.le.s32.totalorder 1, %s28
      %p287 = scmp.lt.s32.totalorder %s28, 3
      %p288 = pnand %p286, %p287
      %p289 = pneg %p288
      // Predicated region
      $region9: #{tpu_custom_call.1} parent=5 // pred_check
        _
      $region10: #{tpu_custom_call.1} parent=5 // pred_check_branch
        %291 = sbr.rel (%p288) target = $region12
      $region11: #{tpu_custom_call.1} parent=5 // pred_region
        %s292 = ssub.s32 %s28, 1
        // Predicated region
        $region13: #{tpu_custom_call.1} parent=11 // pred_check
          %p293 = pneg %p89
        $region14: #{tpu_custom_call.1} parent=11 // pred_check_branch
          %295 = sbr.rel (%p293) target = $region16
        $region15: #{tpu_custom_call.1} parent=11 // pred_region
          %s297 = ssub.s32 512, 512
          %298 = vsyncadd [#allocation6], %s297
          %s299 = sshll.u32 [#allocation5], 4
          %s300 = int_to_ptr.vmem [resolvable:$true] %s299
          %305 = dma.hbm_to_vmem [thread:$0]  %s1, 512, %s300, [#allocation6], 128, 128, 8
        $region16: #{tpu_custom_call.1} parent=11 // pred_fallthru
          _
        // Predicated region
        $region17: #{tpu_custom_call.1} parent=11 // pred_check
          %p306 = pneg %p110
        $region18: #{tpu_custom_call.1} parent=11 // pred_check_branch
          %308 = sbr.rel (%p306) target = $region20
        $region19: #{tpu_custom_call.1} parent=11 // pred_region
          %s310 = ssub.s32 512, 512
          %311 = vsyncadd [#allocation6], %s310
          %s312 = sshll.u32 [#allocation7], 4
          %s313 = int_to_ptr.vmem [resolvable:$true] %s312
          %318 = dma.hbm_to_vmem [thread:$0]  %s2, 512, %s313, [#allocation6], 128, 128, 8
        $region20: #{tpu_custom_call.1} parent=11 // pred_fallthru
          _
      $region12: #{tpu_custom_call.1} parent=5 // pred_fallthru
        _
      %p319 = scmp.lt.s32.totalorder %s28, 2
      // Predicated region
      $region21: #{tpu_custom_call.1} parent=5 // pred_check
        %p320 = pneg %p319
      $region22: #{tpu_custom_call.1} parent=5 // pred_check_branch
        %322 = sbr.rel (%p320) target = $region24
      $region23: #{tpu_custom_call.1} parent=5 // pred_region
        // Predicated region
        $region25: #{tpu_custom_call.1} parent=23 // pred_check
          %p323 = pneg %p62
        $region26: #{tpu_custom_call.1} parent=23 // pred_check_branch
          %325 = sbr.rel (%p323) target = $region28
        $region27: #{tpu_custom_call.1} parent=23 // pred_region
          %s326 = sand.u32 %s52, 1
          %s327 = scalar_lea.sflag [#allocation3], %s326
          %s328 = sand.u32 %s52, 1
          %s329 = smul.addr %s328, 32
          %s330 = scalar_lea.vmem [#allocation2], %s329
          %s332 = ssub.s32 512, 512
          %333 = vsyncadd %s327, %s332
          %s334 = smul.addr %s35, 4
          %s335 = sadd.s32 %s36, %s334
          %s336 = smul.addr %s335, 128
          %s337 = scalar_lea.hbm %s0, %s336
          %s338 = sshll.u32 %s330, 4
          %s339 = int_to_ptr.vmem [resolvable:$true] %s338
          %344 = dma.hbm_to_vmem [thread:$0]  %s337, 512, %s339, %s327, 128, 128, 8
        $region28: #{tpu_custom_call.1} parent=23 // pred_fallthru
          _
        // Predicated region
        $region29: #{tpu_custom_call.1} parent=23 // pred_check
          %p345 = pneg %p132
        $region30: #{tpu_custom_call.1} parent=23 // pred_check_branch
          %347 = sbr.rel (%p345) target = $region32
        $region31: #{tpu_custom_call.1} parent=23 // pred_region
          %s348 = sand.u32 %s28, 1
          %s349 = scalar_lea.sflag [#allocation9], %s348
          %s350 = sand.u32 %s122, 1
          %s351 = smul.addr %s350, 32
          %s352 = scalar_lea.vmem [#allocation8], %s351
          %s354 = ssub.s32 512, 512
          %355 = vsyncadd %s349, %s354
          %s356 = smul.addr %s35, 4
          %s357 = sadd.s32 %s36, %s356
          %s358 = smul.addr %s357, 128
          %s359 = scalar_lea.hbm %s3, %s358
          %s360 = sshll.u32 %s352, 4
          %s361 = int_to_ptr.vmem [resolvable:$true] %s360
          %366 = dma.hbm_to_vmem [thread:$0]  %s359, 512, %s361, %s349, 128, 128, 8
        $region32: #{tpu_custom_call.1} parent=23 // pred_fallthru
          _
        // Predicated region
        $region33: #{tpu_custom_call.1} parent=23 // pred_check
          %p367 = pneg %p160
        $region34: #{tpu_custom_call.1} parent=23 // pred_check_branch
          %369 = sbr.rel (%p367) target = $region36
        $region35: #{tpu_custom_call.1} parent=23 // pred_region
          %s370 = sand.u32 %s28, 1
          %s371 = scalar_lea.sflag [#allocation9], %s370
          %s372 = sand.u32 %s150, 1
          %s373 = smul.addr %s372, 32
          %s374 = scalar_lea.vmem [#allocation10], %s373
          %s376 = ssub.s32 512, 512
          %377 = vsyncadd %s371, %s376
          %s378 = smul.addr %s35, 4
          %s379 = sadd.s32 %s36, %s378
          %s380 = smul.addr %s379, 128
          %s381 = scalar_lea.hbm %s4, %s380
          %s382 = sshll.u32 %s374, 4
          %s383 = int_to_ptr.vmem [resolvable:$true] %s382
          %388 = dma.hbm_to_vmem [thread:$0]  %s381, 512, %s383, %s371, 128, 128, 8
        $region36: #{tpu_custom_call.1} parent=23 // pred_fallthru
          _
      $region24: #{tpu_custom_call.1} parent=5 // pred_fallthru
        _
      %p389 = scmp.le.s32.totalorder 1, %s28
      %p390 = scmp.lt.s32.totalorder %s28, 3
      %p391 = pnand %p389, %p390
      %p392 = pneg %p391
      // Predicated region
      $region37: #{tpu_custom_call.1} parent=5 // pred_check
        _
      $region38: #{tpu_custom_call.1} parent=5 // pred_check_branch
        %394 = sbr.rel (%p391) target = $region40
      $region39: #{tpu_custom_call.1} parent=5 // pred_region
        %s395 = ssub.s32 %s28, 1
        %s396 = sand.u32 %s55, 1
        %s397 = scalar_lea.sflag [#allocation3], %s396
        %s398 = sand.u32 %s55, 1
        %s399 = smul.addr %s398, 32
        %s400 = scalar_lea.vmem [#allocation2], %s399
        // Predicated region
        $region41: #{tpu_custom_call.1} parent=39 // pred_check
          %p401 = pneg %p68
        $region42: #{tpu_custom_call.1} parent=39 // pred_check_branch
          %403 = sbr.rel (%p401) target = $region44
        $region43: #{tpu_custom_call.1} parent=39 // pred_region
          %404 = dma.done %s397, 512
        $region44: #{tpu_custom_call.1} parent=39 // pred_fallthru
          _
        // Predicated region
        $region45: #{tpu_custom_call.1} parent=39 // pred_check
          %p405 = pneg %p89
        $region46: #{tpu_custom_call.1} parent=39 // pred_check_branch
          %407 = sbr.rel (%p405) target = $region48
        $region47: #{tpu_custom_call.1} parent=39 // pred_region
          %408 = dma.done [#allocation6], 512
        $region48: #{tpu_custom_call.1} parent=39 // pred_fallthru
          _
        // Predicated region
        $region49: #{tpu_custom_call.1} parent=39 // pred_check
          %p409 = pneg %p110
        $region50: #{tpu_custom_call.1} parent=39 // pred_check_branch
          %411 = sbr.rel (%p409) target = $region52
        $region51: #{tpu_custom_call.1} parent=39 // pred_region
          %412 = dma.done [#allocation6], 512
        $region52: #{tpu_custom_call.1} parent=39 // pred_fallthru
          _
        %s413 = sand.u32 %s33, 1
        %s414 = scalar_lea.sflag [#allocation9], %s413
        %s415 = sand.u32 %s125, 1
        %s416 = smul.addr %s415, 32
        %s417 = scalar_lea.vmem [#allocation8], %s416
        // Predicated region
        $region53: #{tpu_custom_call.1} parent=39 // pred_check
          %p418 = pneg %p138
        $region54: #{tpu_custom_call.1} parent=39 // pred_check_branch
          %420 = sbr.rel (%p418) target = $region56
        $region55: #{tpu_custom_call.1} parent=39 // pred_region
          %421 = dma.done %s414, 512
        $region56: #{tpu_custom_call.1} parent=39 // pred_fallthru
          _
        %s422 = sand.u32 %s33, 1
        %s423 = scalar_lea.sflag [#allocation9], %s422
        %s424 = sand.u32 %s153, 1
        %s425 = smul.addr %s424, 32
        %s426 = scalar_lea.vmem [#allocation10], %s425
        // Predicated region
        $region57: #{tpu_custom_call.1} parent=39 // pred_check
          %p427 = pneg %p166
        $region58: #{tpu_custom_call.1} parent=39 // pred_check_branch
          %429 = sbr.rel (%p427) target = $region60
        $region59: #{tpu_custom_call.1} parent=39 // pred_region
          %430 = dma.done %s423, 512
        $region60: #{tpu_custom_call.1} parent=39 // pred_fallthru
          _
        %s431 = sand.u32 %s55, 1
        %s432 = scalar_lea.sflag [#allocation3], %s431
        %s433 = sand.u32 %s55, 1
        %s434 = smul.addr %s433, 32
        %s435 = scalar_lea.vmem [#allocation2], %s434
        %p436 = pneg %p68
        %p437 = pneg %p65
        %p438 = pneg %p89
        %p439 = pneg %p86
        %p440 = pneg %p110
        %p441 = pneg %p107
        %s442 = sand.u32 %s33, 1
        %s443 = scalar_lea.sflag [#allocation9], %s442
        %s444 = sand.u32 %s125, 1
        %s445 = smul.addr %s444, 32
        %s446 = scalar_lea.vmem [#allocation8], %s445
        %p447 = pneg %p138
        %p448 = pneg %p135
        %s449 = sand.u32 %s33, 1
        %s450 = scalar_lea.sflag [#allocation9], %s449
        %s451 = sand.u32 %s153, 1
        %s452 = smul.addr %s451, 32
        %s453 = scalar_lea.vmem [#allocation10], %s452
        %p454 = pneg %p166
        %p455 = pneg %p163
        %p456 = pneg %p194
        %p457 = pneg %p191
        %s458 = sand.u32 %s181, 1
        %s459 = scalar_lea.sflag [#allocation4], %s458
        %s460 = sand.u32 %s181, 1
        %s461 = smul.addr %s460, 32
        %s462 = scalar_lea.vmem [#allocation11], %s461
        %p463 = pneg %p222
        %p464 = pneg %p219
        %s465 = sand.u32 %s33, 1
        %s466 = scalar_lea.sflag [#allocation13], %s465
        %s467 = sand.u32 %s209, 1
        %s468 = smul.addr %s467, 32
        %s469 = scalar_lea.vmem [#allocation12], %s468
        %p470 = pneg %p250
        %p471 = pneg %p247
        %s472 = sand.u32 %s33, 1
        %s473 = scalar_lea.sflag [#allocation13], %s472
        %s474 = sand.u32 %s237, 1
        %s475 = smul.addr %s474, 2
        %s476 = scalar_lea.vmem [#allocation14], %s475
        %p477 = pneg %p278
        %p478 = pneg %p275
        %s479 = smul.u32 8, %s38
        %p480 = scmp.lt.s32.totalorder %s37, 1
        %s481 = scalar_select %p480, %s37, 1
        %p482 = scmp.lt.s32.totalorder %s479, 7
        %s483 = scalar_select %p482, %s479, 7
        %s484 = smul.addr %s481, 16
        %s485 = sadd.s32 %s483, %s484
        %s486 = smul.addr %s485, 8
        %s487 = scalar_lea.vmem %s8, %s486
        %s488 = smul.u32 8, %s38
        %p489 = scmp.lt.s32.totalorder %s37, 1
        %s490 = scalar_select %p489, %s37, 1
        %p491 = scmp.lt.s32.totalorder %s488, 7
        %s492 = scalar_select %p491, %s488, 7
        %s493 = smul.addr %s490, 16
        %s494 = sadd.s32 %s492, %s493
        %s495 = smul.addr %s494, 8
        %s496 = scalar_lea.vmem %s8, %s495
        %s497 = smul.u32 8, %s38
        %v498 = vld [vmem:[%s400] sm:$0xff]
        %v499 = vld [vmem:[%s400 + $0x8] sm:$0xff]
        %v500 = vld [vmem:[%s400 + $0x10] sm:$0xff]
        %v501 = vld [vmem:[%s400 + $0x18] sm:$0xff]
        %v502 = vld [vmem:[#allocation5] sm:$0xff]
        %v503 = vld [vmem:[#allocation5 + $0x8] sm:$0xff]
        %v504 = vld [vmem:[#allocation5 + $0x10] sm:$0xff]
        %v505 = vld [vmem:[#allocation5 + $0x18] sm:$0xff]
        %v506 = vld [vmem:[#allocation7] sm:$0xff]
        %v507 = vld [vmem:[#allocation7 + $0x8] sm:$0xff]
        %v508 = vld [vmem:[#allocation7 + $0x10] sm:$0xff]
        %v509 = vld [vmem:[#allocation7 + $0x18] sm:$0xff]
        %vm510 = vcmask 261120
        %v512 = vsel %vm510, %v502, 0
        %v515 = vsel %vm510, %v503, 0
        %v518 = vsel %vm510, %v504, 0
        %v521 = vsel %vm510, %v505, 0
        %523 = vmatprep.subr.mxu0 0.0
        %524 = vmatpush1.msra.mxu0 %v498
        %525 = vmatprep.subr.mxu0 0.0
        %526 = vmatpush1.msra.mxu0 %v499
        %527 = vmatprep.subr.mxu0 0.0
        %528 = vmatpush1.msra.mxu0 %v500
        %529 = vmatprep.subr.mxu0 0.0
        %530 = vmatpush1.msra.mxu0 %v501
        %531 = vmatprep.subr.mxu0 0.0
        %532 = vmatpush1.msra.mxu0 0.0
        %533 = vmatprep.subr.mxu0 0.0
        %534 = vmatpush1.msra.mxu0 0.0
        %535 = vmatprep.subr.mxu0 0.0
        %536 = vmatpush1.msra.mxu0 0.0
        %537 = vmatprep.subr.mxu0 0.0
        %538 = vmatpush1.msra.mxu0 0.0
        %539 = vmatprep.subr.mxu0 0.0
        %540 = vmatpush1.msra.mxu0 0.0
        %541 = vmatprep.subr.mxu0 0.0
        %542 = vmatpush1.msra.mxu0 0.0
        %543 = vmatprep.subr.mxu0 0.0
        %544 = vmatpush1.msra.mxu0 0.0
        %545 = vmatprep.subr.mxu0 0.0
        %546 = vmatpush1.msra.mxu0 0.0
        %547 = vmatprep.subr.mxu0 0.0
        %548 = vmatpush1.msra.mxu0 0.0
        %549 = vmatprep.subr.mxu0 0.0
        %550 = vmatpush1.msra.mxu0 0.0
        %551 = vmatprep.subr.mxu0 0.0
        %552 = vmatpush1.msra.mxu0 0.0
        %553 = vmatprep.subr.mxu0 0.0
        %554 = vmatpush1.msra.mxu0 0.0
        %555 = vmatprep.subr.mxu0 0.0
        %556 = vmatpush1.msra.mxu0 0.0
        %557 = vmatprep.subr.mxu0 0.0
        %558 = vmatpush1.msra.mxu0 0.0
        %559 = vmatprep.subr.mxu0 0.0
        %560 = vmatpush1.msra.mxu0 0.0
        %561 = vmatprep.subr.mxu0 0.0
        %562 = vmatpush1.msra.mxu0 0.0
        %563 = vmatprep.subr.mxu0 0.0
        %564 = vmatpush1.msra.mxu0 0.0
        %565 = vmatprep.subr.mxu0 0.0
        %566 = vmatpush1.msra.mxu0 0.0
        %567 = vmatprep.subr.mxu0 0.0
        %568 = vmatpush1.msra.mxu0 0.0
        %569 = vmatprep.subr.mxu0 0.0
        %570 = vmatpush1.msra.mxu0 0.0
        %571 = vmatprep.subr.mxu0 0.0
        %572 = vmatpush1.msra.mxu0 0.0
        %573 = vmatprep.subr.mxu0 0.0
        %574 = vmatpush1.msra.mxu0 0.0
        %575 = vmatprep.subr.mxu0 0.0
        %576 = vmatpush1.msra.mxu0 0.0
        %577 = vmatprep.subr.mxu0 0.0
        %578 = vmatpush1.msra.mxu0 0.0
        %579 = vmatprep.subr.mxu0 0.0
        %580 = vmatpush1.msra.mxu0 0.0
        %581 = vmatprep.subr.mxu0 0.0
        %582 = vmatpush1.msra.mxu0 0.0
        %583 = vmatprep.subr.mxu0 0.0
        %584 = vmatpush1.msra.mxu0 0.0
        %585 = vmatprep.subr.mxu0 0.0
        %586 = vmatpush1.msra.mxu0 0.0
        %587 = vmatprep.mubr.f32.mxu0 0.0
        %588 = vmatmul.mubr.f32.gmra.mrb[0].mxu0 %v512
        %v589 = vpop.f32.mrb[0].mxu0
        %v590 = vadd.f32 0.0, %v589
        %v591 = vpop.f32.mrb[0].mxu0
        %592 = vmatprep.mubr.f32.mxu0 0.0
        %593 = vmatmul.mubr.f32.gmra.mrb[0].mxu0 %v515
        %v594 = vpop.f32.mrb[0].mxu0
        %v595 = vadd.f32 0.0, %v594
        %v596 = vpop.f32.mrb[0].mxu0
        %597 = vmatprep.mubr.f32.mxu0 0.0
        %598 = vmatmul.mubr.f32.gmra.mrb[0].mxu0 %v518
        %v599 = vpop.f32.mrb[0].mxu0
        %v600 = vadd.f32 0.0, %v599
        %v601 = vpop.f32.mrb[0].mxu0
        %602 = vmatprep.mubr.f32.mxu0 0.0
        %603 = vmatmul.mubr.f32.gmra.mrb[0].mxu0 %v521
        %v604 = vpop.f32.mrb[0].mxu0
        %v605 = vadd.f32 0.0, %v604
        %v606 = vpop.f32.mrb[0].mxu0
        %607 = vdwg.mxu0
        %vm608 = vcmask 130048
        %v610 = vsel %vm608, %v506, 0
        %v613 = vsel %vm608, %v507, 0
        %615 = vmatprep.subr.mxu0 0.0
        %616 = vmatpush1.msra.mxu0 %v590
        %617 = vmatprep.subr.mxu0 0.0
        %618 = vmatpush1.msra.mxu0 %v595
        %619 = vmatprep.subr.mxu0 0.0
        %620 = vmatpush1.msra.mxu0 0.0
        %621 = vmatprep.subr.mxu0 0.0
        %622 = vmatpush1.msra.mxu0 0.0
        %623 = vmatprep.subr.mxu0 0.0
        %624 = vmatpush1.msra.mxu0 0.0
        %625 = vmatprep.subr.mxu0 0.0
        %626 = vmatpush1.msra.mxu0 0.0
        %627 = vmatprep.subr.mxu0 0.0
        %628 = vmatpush1.msra.mxu0 0.0
        %629 = vmatprep.subr.mxu0 0.0
        %630 = vmatpush1.msra.mxu0 0.0
        %631 = vmatprep.subr.mxu0 0.0
        %632 = vmatpush1.msra.mxu0 0.0
        %633 = vmatprep.subr.mxu0 0.0
        %634 = vmatpush1.msra.mxu0 0.0
        %635 = vmatprep.subr.mxu0 0.0
        %636 = vmatpush1.msra.mxu0 0.0
        %637 = vmatprep.subr.mxu0 0.0
        %638 = vmatpush1.msra.mxu0 0.0
        %639 = vmatprep.subr.mxu0 0.0
        %640 = vmatpush1.msra.mxu0 0.0
        %641 = vmatprep.subr.mxu0 0.0
        %642 = vmatpush1.msra.mxu0 0.0
        %643 = vmatprep.subr.mxu0 0.0
        %644 = vmatpush1.msra.mxu0 0.0
        %645 = vmatprep.subr.mxu0 0.0
        %646 = vmatpush1.msra.mxu0 0.0
        %647 = vmatprep.subr.mxu0 0.0
        %648 = vmatpush1.msra.mxu0 0.0
        %649 = vmatprep.subr.mxu0 0.0
        %650 = vmatpush1.msra.mxu0 0.0
        %651 = vmatprep.subr.mxu0 0.0
        %652 = vmatpush1.msra.mxu0 0.0
        %653 = vmatprep.subr.mxu0 0.0
        %654 = vmatpush1.msra.mxu0 0.0
        %655 = vmatprep.subr.mxu0 0.0
        %656 = vmatpush1.msra.mxu0 0.0
        %657 = vmatprep.subr.mxu0 0.0
        %658 = vmatpush1.msra.mxu0 0.0
        %659 = vmatprep.subr.mxu0 0.0
        %660 = vmatpush1.msra.mxu0 0.0
        %661 = vmatprep.subr.mxu0 0.0
        %662 = vmatpush1.msra.mxu0 0.0
        %663 = vmatprep.subr.mxu0 0.0
        %664 = vmatpush1.msra.mxu0 0.0
        %665 = vmatprep.subr.mxu0 0.0
        %666 = vmatpush1.msra.mxu0 0.0
        %667 = vmatprep.subr.mxu0 0.0
        %668 = vmatpush1.msra.mxu0 0.0
        %669 = vmatprep.subr.mxu0 0.0
        %670 = vmatpush1.msra.mxu0 0.0
        %671 = vmatprep.subr.mxu0 0.0
        %672 = vmatpush1.msra.mxu0 0.0
        %673 = vmatprep.subr.mxu0 0.0
        %674 = vmatpush1.msra.mxu0 0.0
        %675 = vmatprep.subr.mxu0 0.0
        %676 = vmatpush1.msra.mxu0 0.0
        %677 = vmatprep.subr.mxu0 0.0
        %678 = vmatpush1.msra.mxu0 0.0
        %679 = vmatprep.mubr.f32.mxu0 0.0
        %680 = vmatmul.mubr.f32.gmra.mrb[0].mxu0 %v610
        %v681 = vpop.f32.mrb[0].mxu0
        %v682 = vadd.f32 0.0, %v681
        %v683 = vpop.f32.mrb[0].mxu0
        %684 = vmatprep.mubr.f32.mxu0 0.0
        %685 = vmatmul.mubr.f32.gmra.mrb[0].mxu0 %v613
        %v686 = vpop.f32.mrb[0].mxu0
        %v687 = vadd.f32 0.0, %v686
        %v688 = vpop.f32.mrb[0].mxu0
        %689 = vdwg.mxu0
        %v691 = vsel %vm608, %v508, 0
        %v694 = vsel %vm608, %v509, 0
        %696 = vmatprep.subr.mxu0 0.0
        %697 = vmatpush1.msra.mxu0 %v600
        %698 = vmatprep.subr.mxu0 0.0
        %699 = vmatpush1.msra.mxu0 %v605
        %700 = vmatprep.subr.mxu0 0.0
        %701 = vmatpush1.msra.mxu0 0.0
        %702 = vmatprep.subr.mxu0 0.0
        %703 = vmatpush1.msra.mxu0 0.0
        %704 = vmatprep.subr.mxu0 0.0
        %705 = vmatpush1.msra.mxu0 0.0
        %706 = vmatprep.subr.mxu0 0.0
        %707 = vmatpush1.msra.mxu0 0.0
        %708 = vmatprep.subr.mxu0 0.0
        %709 = vmatpush1.msra.mxu0 0.0
        %710 = vmatprep.subr.mxu0 0.0
        %711 = vmatpush1.msra.mxu0 0.0
        %712 = vmatprep.subr.mxu0 0.0
        %713 = vmatpush1.msra.mxu0 0.0
        %714 = vmatprep.subr.mxu0 0.0
        %715 = vmatpush1.msra.mxu0 0.0
        %716 = vmatprep.subr.mxu0 0.0
        %717 = vmatpush1.msra.mxu0 0.0
        %718 = vmatprep.subr.mxu0 0.0
        %719 = vmatpush1.msra.mxu0 0.0
        %720 = vmatprep.subr.mxu0 0.0
        %721 = vmatpush1.msra.mxu0 0.0
        %722 = vmatprep.subr.mxu0 0.0
        %723 = vmatpush1.msra.mxu0 0.0
        %724 = vmatprep.subr.mxu0 0.0
        %725 = vmatpush1.msra.mxu0 0.0
        %726 = vmatprep.subr.mxu0 0.0
        %727 = vmatpush1.msra.mxu0 0.0
        %728 = vmatprep.subr.mxu0 0.0
        %729 = vmatpush1.msra.mxu0 0.0
        %730 = vmatprep.subr.mxu0 0.0
        %731 = vmatpush1.msra.mxu0 0.0
        %732 = vmatprep.subr.mxu0 0.0
        %733 = vmatpush1.msra.mxu0 0.0
        %734 = vmatprep.subr.mxu0 0.0
        %735 = vmatpush1.msra.mxu0 0.0
        %736 = vmatprep.subr.mxu0 0.0
        %737 = vmatpush1.msra.mxu0 0.0
        %738 = vmatprep.subr.mxu0 0.0
        %739 = vmatpush1.msra.mxu0 0.0
        %740 = vmatprep.subr.mxu0 0.0
        %741 = vmatpush1.msra.mxu0 0.0
        %742 = vmatprep.subr.mxu0 0.0
        %743 = vmatpush1.msra.mxu0 0.0
        %744 = vmatprep.subr.mxu0 0.0
        %745 = vmatpush1.msra.mxu0 0.0
        %746 = vmatprep.subr.mxu0 0.0
        %747 = vmatpush1.msra.mxu0 0.0
        %748 = vmatprep.subr.mxu0 0.0
        %749 = vmatpush1.msra.mxu0 0.0
        %750 = vmatprep.subr.mxu0 0.0
        %751 = vmatpush1.msra.mxu0 0.0
        %752 = vmatprep.subr.mxu0 0.0
        %753 = vmatpush1.msra.mxu0 0.0
        %754 = vmatprep.subr.mxu0 0.0
        %755 = vmatpush1.msra.mxu0 0.0
        %756 = vmatprep.subr.mxu0 0.0
        %757 = vmatpush1.msra.mxu0 0.0
        %758 = vmatprep.subr.mxu0 0.0
        %759 = vmatpush1.msra.mxu0 0.0
        %760 = vmatprep.mubr.f32.mxu0 0.0
        %761 = vmatmul.mubr.f32.gmra.mrb[0].mxu0 %v691
        %v762 = vpop.f32.mrb[0].mxu0
        %v763 = vadd.f32 0.0, %v762
        %v764 = vpop.f32.mrb[0].mxu0
        %765 = vmatprep.mubr.f32.mxu0 0.0
        %766 = vmatmul.mubr.f32.gmra.mrb[0].mxu0 %v694
        %v767 = vpop.f32.mrb[0].mxu0
        %v768 = vadd.f32 0.0, %v767
        %v769 = vpop.f32.mrb[0].mxu0
        %770 = vdwg.mxu0
        %v771 = vmul.f32 %v590, %v590
        %v772 = vmul.f32 %v595, %v595
        %v773 = vmul.f32 %v600, %v600
        %v774 = vmul.f32 %v605, %v605
        %vm775 = vcmask 523264
        %v776 = vsel %vm775, %v771, 0.0
        %v777 = vsel %vm775, %v772, 0.0
        %v778 = vadd.f32 %v776, %v777
        %v779 = vrot.slane %v778, 4
        %v780 = vadd.f32 %v778, %v779
        %v781 = vrot.slane %v780, 2
        %v782 = vadd.f32 %v780, %v781
        %v783 = vrot.slane %v782, 1
        %v784 = vadd.f32 %v782, %v783
        %v785 = vsel %vm775, %v773, 0.0
        %v786 = vsel %vm775, %v774, 0.0
        %v787 = vadd.f32 %v785, %v786
        %v788 = vrot.slane %v787, 4
        %v789 = vadd.f32 %v787, %v788
        %v790 = vrot.slane %v789, 2
        %v791 = vadd.f32 %v789, %v790
        %v792 = vrot.slane %v791, 1
        %v793 = vadd.f32 %v791, %v792
        %v794 = vmul.f32 %v506, %v506
        %v795 = vmul.f32 %v507, %v507
        %v796 = vmul.f32 %v508, %v508
        %v797 = vmul.f32 %v509, %v509
        %v798 = vsel %vm608, %v794, 0.0
        %799 = vadd.xlane.f32.xlu0 %v798
        %v800 = vpop.xlane.xlu0 %799
        %v801 = vsel %vm608, %v795, 0.0
        %802 = vadd.xlane.f32.xlu0 %v801
        %v803 = vpop.xlane.xlu0 %802
        %v804 = vsel %vm608, %v796, 0.0
        %805 = vadd.xlane.f32.xlu0 %v804
        %v806 = vpop.xlane.xlu0 %805
        %v807 = vsel %vm608, %v797, 0.0
        %808 = vadd.xlane.f32.xlu0 %v807
        %v809 = vpop.xlane.xlu0 %808
        %v810 = vadd.f32 %v784, %v800
        %v811 = vadd.f32 %v784, %v803
        %v812 = vadd.f32 %v793, %v806
        %v813 = vadd.f32 %v793, %v809
        %v814 = vmul.f32 %v682, 2.0
        %v815 = vmul.f32 %v687, 2.0
        %v816 = vmul.f32 %v763, 2.0
        %v817 = vmul.f32 %v768, 2.0
        %v818 = vsub.f32 %v810, %v814
        %v819 = vsub.f32 %v811, %v815
        %v820 = vsub.f32 %v812, %v816
        %v821 = vsub.f32 %v813, %v817
        %v822 = vsub.f32 0.0, %v818
        %v823 = vsub.f32 0.0, %v819
        %v824 = vsub.f32 0.0, %v820
        %v825 = vsub.f32 0.0, %v821
        %v826 = vmul.f32 %v822, 0.25
        %v827 = vmul.f32 %v823, 0.25
        %v828 = vmul.f32 %v824, 0.25
        %v829 = vmul.f32 %v825, 0.25
        %v830 = vld [vmem:[%s417] sm:$0xff]
        %v831 = vld [vmem:[%s417 + $0x8] sm:$0xff]
        %v832 = vld [vmem:[%s417 + $0x10] sm:$0xff]
        %v833 = vld [vmem:[%s417 + $0x18] sm:$0xff]
        %vm834 = vcmp.lt.f32.partialorder %v830, 0.5
        %vm835 = vcmp.lt.f32.partialorder %v831, 0.5
        %vm836 = vcmp.lt.f32.partialorder %v832, 0.5
        %vm837 = vcmp.lt.f32.partialorder %v833, 0.5
        %v838 = vsub.f32 %v826, 1e+09
        %v839 = vsub.f32 %v827, 1e+09
        %v840 = vsub.f32 %v828, 1e+09
        %v841 = vsub.f32 %v829, 1e+09
        %v842 = vsel %vm834, %v838, %v826
        %v843 = vsel %vm835, %v839, %v827
        %v844 = vsel %vm836, %v840, %v828
        %v845 = vsel %vm837, %v841, %v829
        %846 = vxpose.xlu0.b32.start [1/16] %v842, 128
        %847 = vxpose.xlu0.b32.cont [2/16] %v843, 128
        %848 = vxpose.xlu0.b32.cont [3/16] 0.0, 128
        %849 = vxpose.xlu0.b32.cont [4/16] 0.0, 128
        %850 = vxpose.xlu0.b32.cont [5/16] 0.0, 128
        %851 = vxpose.xlu0.b32.cont [6/16] 0.0, 128
        %852 = vxpose.xlu0.b32.cont [7/16] 0.0, 128
        %853 = vxpose.xlu0.b32.cont [8/16] 0.0, 128
        %854 = vxpose.xlu0.b32.cont [9/16] 0.0, 128
        %855 = vxpose.xlu0.b32.cont [10/16] 0.0, 128
        %856 = vxpose.xlu0.b32.cont [11/16] 0.0, 128
        %857 = vxpose.xlu0.b32.cont [12/16] 0.0, 128
        %858 = vxpose.xlu0.b32.cont [13/16] 0.0, 128
        %859 = vxpose.xlu0.b32.cont [14/16] 0.0, 128
        %860 = vxpose.xlu0.b32.cont [15/16] 0.0, 128
        %861 = vxpose.xlu0.b32.end [16/16] 0.0, 128
        %v862 = vpop.trf.xlu0
        %v863 = vpop.trf.xlu0
        %v864 = vpop.trf.xlu0
        %v865 = vpop.trf.xlu0
        %v866 = vpop.trf.xlu0
        %v867 = vpop.trf.xlu0
        %v868 = vpop.trf.xlu0
        %v869 = vpop.trf.xlu0
        %v870 = vpop.trf.xlu0
        %v871 = vpop.trf.xlu0
        %v872 = vpop.trf.xlu0
        %v873 = vpop.trf.xlu0
        %v874 = vpop.trf.xlu0
        %v875 = vpop.trf.xlu0
        %v876 = vpop.trf.xlu0
        %v877 = vpop.trf.xlu0
        %878 = vxpose.xlu0.b32.start [1/16] %v844, 128
        %879 = vxpose.xlu0.b32.cont [2/16] %v845, 128
        %880 = vxpose.xlu0.b32.cont [3/16] 0.0, 128
        %881 = vxpose.xlu0.b32.cont [4/16] 0.0, 128
        %882 = vxpose.xlu0.b32.cont [5/16] 0.0, 128
        %883 = vxpose.xlu0.b32.cont [6/16] 0.0, 128
        %884 = vxpose.xlu0.b32.cont [7/16] 0.0, 128
        %885 = vxpose.xlu0.b32.cont [8/16] 0.0, 128
        %886 = vxpose.xlu0.b32.cont [9/16] 0.0, 128
        %887 = vxpose.xlu0.b32.cont [10/16] 0.0, 128
        %888 = vxpose.xlu0.b32.cont [11/16] 0.0, 128
        %889 = vxpose.xlu0.b32.cont [12/16] 0.0, 128
        %890 = vxpose.xlu0.b32.cont [13/16] 0.0, 128
        %891 = vxpose.xlu0.b32.cont [14/16] 0.0, 128
        %892 = vxpose.xlu0.b32.cont [15/16] 0.0, 128
        %893 = vxpose.xlu0.b32.end [16/16] 0.0, 128
        %v894 = vpop.trf.xlu0
        %v895 = vpop.trf.xlu0
        %v896 = vpop.trf.xlu0
        %v897 = vpop.trf.xlu0
        %v898 = vpop.trf.xlu0
        %v899 = vpop.trf.xlu0
        %v900 = vpop.trf.xlu0
        %v901 = vpop.trf.xlu0
        %v902 = vpop.trf.xlu0
        %v903 = vpop.trf.xlu0
        %v904 = vpop.trf.xlu0
        %v905 = vpop.trf.xlu0
        %v906 = vpop.trf.xlu0
        %v907 = vpop.trf.xlu0
        %v908 = vpop.trf.xlu0
        %v909 = vpop.trf.xlu0
        %910 = vst.msk [vmem:[%s496] sm:$0xff] %vm608, %v862
        %911 = vst.msk [vmem:[%s496 + $0x8] sm:$0xff] %vm608, %v863
        %912 = vst.msk [vmem:[%s496 + $0x10] sm:$0xff] %vm608, %v864
        %913 = vst.msk [vmem:[%s496 + $0x18] sm:$0xff] %vm608, %v865
        %914 = vst.msk [vmem:[%s496 + $0x20] sm:$0xff] %vm608, %v866
        %915 = vst.msk [vmem:[%s496 + $0x28] sm:$0xff] %vm608, %v867
        %916 = vst.msk [vmem:[%s496 + $0x30] sm:$0xff] %vm608, %v868
        %917 = vst.msk [vmem:[%s496 + $0x38] sm:$0xff] %vm608, %v869
        %918 = vst.msk [vmem:[%s496 + $0x40] sm:$0xff] %vm608, %v894
        %919 = vst.msk [vmem:[%s496 + $0x48] sm:$0xff] %vm608, %v895
        %920 = vst.msk [vmem:[%s496 + $0x50] sm:$0xff] %vm608, %v896
        %921 = vst.msk [vmem:[%s496 + $0x58] sm:$0xff] %vm608, %v897
        %922 = vst.msk [vmem:[%s496 + $0x60] sm:$0xff] %vm608, %v898
        %923 = vst.msk [vmem:[%s496 + $0x68] sm:$0xff] %vm608, %v899
        %924 = vst.msk [vmem:[%s496 + $0x70] sm:$0xff] %vm608, %v900
        %925 = vst.msk [vmem:[%s496 + $0x78] sm:$0xff] %vm608, %v901
        %v926 = vlaneseq
        %v927 = vshrl.u32 %v926, 7
        %v928 = vadd.s32 %v927, 8
        %v929 = vld [vmem:[%s426] sm:$0xff]
        %v930 = vld [vmem:[%s426 + $0x8] sm:$0xff]
        %v931 = vld [vmem:[%s426 + $0x10] sm:$0xff]
        %v932 = vld [vmem:[%s426 + $0x18] sm:$0xff]
        %v933 = vadd.f32 %v842, %v929
        %v934 = vadd.f32 %v843, %v930
        %v935 = vadd.f32 %v844, %v931
        %v936 = vadd.f32 %v845, %v932
        %v937 = vsel %vm775, %v933, -inf
        %v938 = vsel %vm775, %v934, -inf
        %v939 = vmax.f32 %v937, %v938
        %v940 = vrot.slane %v939, 4
        %v941 = vmax.f32 %v939, %v940
        %v942 = vrot.slane %v941, 2
        %v943 = vmax.f32 %v941, %v942
        %v944 = vrot.slane %v943, 1
        %v945 = vmax.f32 %v943, %v944
        %v946 = vsel %vm775, %v935, -inf
        %v947 = vsel %vm775, %v936, -inf
        %v948 = vmax.f32 %v946, %v947
        %v949 = vrot.slane %v948, 4
        %v950 = vmax.f32 %v948, %v949
        %v951 = vrot.slane %v950, 2
        %v952 = vmax.f32 %v950, %v951
        %v953 = vrot.slane %v952, 1
        %v954 = vmax.f32 %v952, %v953
        %vm955 = vcmp.eq.f32.partialorder %v933, %v945
        %vm956 = vcmp.eq.f32.partialorder %v934, %v945
        %vm957 = vcmp.eq.f32.partialorder %v935, %v954
        %vm958 = vcmp.eq.f32.partialorder %v936, %v954
        %v959 = vsel %vm955, %v927, 16
        %v960 = vsel %vm956, %v928, 16
        %v961 = vsel %vm957, %v927, 16
        %v962 = vsel %vm958, %v928, 16
        %v963 = vsel %vm775, %v959, 2147483647
        %v964 = vsel %vm775, %v960, 2147483647
        %vm965 = vcmp.lt.s32.totalorder %v963, %v964
        %v966 = vsel %vm965, %v963, %v964
        %v967 = vrot.slane %v966, 4
        %vm968 = vcmp.lt.s32.totalorder %v966, %v967
        %v969 = vsel %vm968, %v966, %v967
        %v970 = vrot.slane %v969, 2
        %vm971 = vcmp.lt.s32.totalorder %v969, %v970
        %v972 = vsel %vm971, %v969, %v970
        %v973 = vrot.slane %v972, 1
        %vm974 = vcmp.lt.s32.totalorder %v972, %v973
        %v975 = vsel %vm974, %v972, %v973
        %v976 = vsel %vm775, %v961, 2147483647
        %v977 = vsel %vm775, %v962, 2147483647
        %vm978 = vcmp.lt.s32.totalorder %v976, %v977
        %v979 = vsel %vm978, %v976, %v977
        %v980 = vrot.slane %v979, 4
        %vm981 = vcmp.lt.s32.totalorder %v979, %v980
        %v982 = vsel %vm981, %v979, %v980
        %v983 = vrot.slane %v982, 2
        %vm984 = vcmp.lt.s32.totalorder %v982, %v983
        %v985 = vsel %vm984, %v982, %v983
        %v986 = vrot.slane %v985, 1
        %vm987 = vcmp.lt.s32.totalorder %v985, %v986
        %v988 = vsel %vm987, %v985, %v986
        %vm989 = vcmp.eq.s32.totalorder %v927, %v975
        %vm990 = vcmp.eq.s32.totalorder %v928, %v975
        %vm991 = vcmp.eq.s32.totalorder %v927, %v988
        %vm992 = vcmp.eq.s32.totalorder %v928, %v988
        %v993 = vsel %vm989, 1, 0
        %v994 = vsel %vm990, 1, 0
        %v995 = vsel %vm991, 1, 0
        %v996 = vsel %vm992, 1, 0
        %v997 = vcvt.s32.f32 %v993
        %v998 = vcvt.s32.f32 %v994
        %v999 = vcvt.s32.f32 %v995
        %v1000 = vcvt.s32.f32 %v996
        %v1001 = vsel %vm775, %v842, -inf
        %v1002 = vsel %vm775, %v843, -inf
        %v1003 = vmax.f32 %v1001, %v1002
        %v1004 = vrot.slane %v1003, 4
        %v1005 = vmax.f32 %v1003, %v1004
        %v1006 = vrot.slane %v1005, 2
        %v1007 = vmax.f32 %v1005, %v1006
        %v1008 = vrot.slane %v1007, 1
        %v1009 = vmax.f32 %v1007, %v1008
        %v1010 = vsel %vm775, %v844, -inf
        %v1011 = vsel %vm775, %v845, -inf
        %v1012 = vmax.f32 %v1010, %v1011
        %v1013 = vrot.slane %v1012, 4
        %v1014 = vmax.f32 %v1012, %v1013
        %v1015 = vrot.slane %v1014, 2
        %v1016 = vmax.f32 %v1014, %v1015
        %v1017 = vrot.slane %v1016, 1
        %v1018 = vmax.f32 %v1016, %v1017
        %vm1019 = vcmp.eq.f32.partialorder %v842, %v1009
        %vm1020 = vcmp.eq.f32.partialorder %v843, %v1009
        %vm1021 = vcmp.eq.f32.partialorder %v844, %v1018
        %vm1022 = vcmp.eq.f32.partialorder %v845, %v1018
        %v1023 = vsel %vm1019, %v927, 16
        %v1024 = vsel %vm1020, %v928, 16
        %v1025 = vsel %vm1021, %v927, 16
        %v1026 = vsel %vm1022, %v928, 16
        %v1027 = vsel %vm775, %v1023, 2147483647
        %v1028 = vsel %vm775, %v1024, 2147483647
        %vm1029 = vcmp.lt.s32.totalorder %v1027, %v1028
        %v1030 = vsel %vm1029, %v1027, %v1028
        %v1031 = vrot.slane %v1030, 4
        %vm1032 = vcmp.lt.s32.totalorder %v1030, %v1031
        %v1033 = vsel %vm1032, %v1030, %v1031
        %v1034 = vrot.slane %v1033, 2
        %vm1035 = vcmp.lt.s32.totalorder %v1033, %v1034
        %v1036 = vsel %vm1035, %v1033, %v1034
        %v1037 = vrot.slane %v1036, 1
        %vm1038 = vcmp.lt.s32.totalorder %v1036, %v1037
        %v1039 = vsel %vm1038, %v1036, %v1037
        %v1040 = vsel %vm775, %v1025, 2147483647
        %v1041 = vsel %vm775, %v1026, 2147483647
        %vm1042 = vcmp.lt.s32.totalorder %v1040, %v1041
        %v1043 = vsel %vm1042, %v1040, %v1041
        %v1044 = vrot.slane %v1043, 4
        %vm1045 = vcmp.lt.s32.totalorder %v1043, %v1044
        %v1046 = vsel %vm1045, %v1043, %v1044
        %v1047 = vrot.slane %v1046, 2
        %vm1048 = vcmp.lt.s32.totalorder %v1046, %v1047
        %v1049 = vsel %vm1048, %v1046, %v1047
        %v1050 = vrot.slane %v1049, 1
        %vm1051 = vcmp.lt.s32.totalorder %v1049, %v1050
        %v1052 = vsel %vm1051, %v1049, %v1050
        %vm1053 = vcmask 1041409
        %v1054 = vsel %vm1053, %v1052, %v1039
        %vm1055 = vcmask 517120
        %1056 = vst.msk [vmem:[%s476] sm:$0x3] %vm1055, %v1054
        %1057 = vxpose.xlu0.b32.start [1/16] %v506, 128
        %1058 = vxpose.xlu0.b32.cont [2/16] %v507, 128
        %1059 = vxpose.xlu0.b32.cont [3/16] 0.0, 128
        %1060 = vxpose.xlu0.b32.cont [4/16] 0.0, 128
        %1061 = vxpose.xlu0.b32.cont [5/16] 0.0, 128
        %1062 = vxpose.xlu0.b32.cont [6/16] 0.0, 128
        %1063 = vxpose.xlu0.b32.cont [7/16] 0.0, 128
        %1064 = vxpose.xlu0.b32.cont [8/16] 0.0, 128
        %1065 = vxpose.xlu0.b32.cont [9/16] 0.0, 128
        %1066 = vxpose.xlu0.b32.cont [10/16] 0.0, 128
        %1067 = vxpose.xlu0.b32.cont [11/16] 0.0, 128
        %1068 = vxpose.xlu0.b32.cont [12/16] 0.0, 128
        %1069 = vxpose.xlu0.b32.cont [13/16] 0.0, 128
        %1070 = vxpose.xlu0.b32.cont [14/16] 0.0, 128
        %1071 = vxpose.xlu0.b32.cont [15/16] 0.0, 128
        %1072 = vxpose.xlu0.b32.end [16/16] 0.0, 128
        %v1073 = vpop.trf.xlu0
        %v1074 = vpop.trf.xlu0
        %v1075 = vpop.trf.xlu0
        %v1076 = vpop.trf.xlu0
        %v1077 = vpop.trf.xlu0
        %v1078 = vpop.trf.xlu0
        %v1079 = vpop.trf.xlu0
        %v1080 = vpop.trf.xlu0
        %v1081 = vpop.trf.xlu0
        %v1082 = vpop.trf.xlu0
        %v1083 = vpop.trf.xlu0
        %v1084 = vpop.trf.xlu0
        %v1085 = vpop.trf.xlu0
        %v1086 = vpop.trf.xlu0
        %v1087 = vpop.trf.xlu0
        %v1088 = vpop.trf.xlu0
        %v1090 = vsel %vm608, %v1073, 0
        %v1093 = vsel %vm608, %v1074, 0
        %1095 = vmatprep.subr.mxu0 0.0
        %1096 = vmatpush1.msra.mxu0 %v997
        %1097 = vmatprep.subr.mxu0 0.0
        %1098 = vmatpush1.msra.mxu0 %v998
        %1099 = vmatprep.subr.mxu0 0.0
        %1100 = vmatpush1.msra.mxu0 0.0
        %1101 = vmatprep.subr.mxu0 0.0
        %1102 = vmatpush1.msra.mxu0 0.0
        %1103 = vmatprep.subr.mxu0 0.0
        %1104 = vmatpush1.msra.mxu0 0.0
        %1105 = vmatprep.subr.mxu0 0.0
        %1106 = vmatpush1.msra.mxu0 0.0
        %1107 = vmatprep.subr.mxu0 0.0
        %1108 = vmatpush1.msra.mxu0 0.0
        %1109 = vmatprep.subr.mxu0 0.0
        %1110 = vmatpush1.msra.mxu0 0.0
        %1111 = vmatprep.subr.mxu0 0.0
        %1112 = vmatpush1.msra.mxu0 0.0
        %1113 = vmatprep.subr.mxu0 0.0
        %1114 = vmatpush1.msra.mxu0 0.0
        %1115 = vmatprep.subr.mxu0 0.0
        %1116 = vmatpush1.msra.mxu0 0.0
        %1117 = vmatprep.subr.mxu0 0.0
        %1118 = vmatpush1.msra.mxu0 0.0
        %1119 = vmatprep.subr.mxu0 0.0
        %1120 = vmatpush1.msra.mxu0 0.0
        %1121 = vmatprep.subr.mxu0 0.0
        %1122 = vmatpush1.msra.mxu0 0.0
        %1123 = vmatprep.subr.mxu0 0.0
        %1124 = vmatpush1.msra.mxu0 0.0
        %1125 = vmatprep.subr.mxu0 0.0
        %1126 = vmatpush1.msra.mxu0 0.0
        %1127 = vmatprep.subr.mxu0 0.0
        %1128 = vmatpush1.msra.mxu0 0.0
        %1129 = vmatprep.subr.mxu0 0.0
        %1130 = vmatpush1.msra.mxu0 0.0
        %1131 = vmatprep.subr.mxu0 0.0
        %1132 = vmatpush1.msra.mxu0 0.0
        %1133 = vmatprep.subr.mxu0 0.0
        %1134 = vmatpush1.msra.mxu0 0.0
        %1135 = vmatprep.subr.mxu0 0.0
        %1136 = vmatpush1.msra.mxu0 0.0
        %1137 = vmatprep.subr.mxu0 0.0
        %1138 = vmatpush1.msra.mxu0 0.0
        %1139 = vmatprep.subr.mxu0 0.0
        %1140 = vmatpush1.msra.mxu0 0.0
        %1141 = vmatprep.subr.mxu0 0.0
        %1142 = vmatpush1.msra.mxu0 0.0
        %1143 = vmatprep.subr.mxu0 0.0
        %1144 = vmatpush1.msra.mxu0 0.0
        %1145 = vmatprep.subr.mxu0 0.0
        %1146 = vmatpush1.msra.mxu0 0.0
        %1147 = vmatprep.subr.mxu0 0.0
        %1148 = vmatpush1.msra.mxu0 0.0
        %1149 = vmatprep.subr.mxu0 0.0
        %1150 = vmatpush1.msra.mxu0 0.0
        %1151 = vmatprep.subr.mxu0 0.0
        %1152 = vmatpush1.msra.mxu0 0.0
        %1153 = vmatprep.subr.mxu0 0.0
        %1154 = vmatpush1.msra.mxu0 0.0
        %1155 = vmatprep.subr.mxu0 0.0
        %1156 = vmatpush1.msra.mxu0 0.0
        %1157 = vmatprep.subr.mxu0 0.0
        %1158 = vmatpush1.msra.mxu0 0.0
        %1159 = vmatprep.mubr.f32.mxu0 0.0
        %1160 = vmatmul.mubr.f32.gmra.mrb[0].mxu0 %v1090
        %v1161 = vpop.f32.mrb[0].mxu0
        %v1162 = vadd.f32 0.0, %v1161
        %v1163 = vpop.f32.mrb[0].mxu0
        %1164 = vmatprep.mubr.f32.mxu0 0.0
        %1165 = vmatmul.mubr.f32.gmra.mrb[0].mxu0 %v1093
        %v1166 = vpop.f32.mrb[0].mxu0
        %v1167 = vadd.f32 0.0, %v1166
        %v1168 = vpop.f32.mrb[0].mxu0
        %1169 = vdwg.mxu0
        %1170 = vxpose.xlu0.b32.start [1/16] %v508, 128
        %1171 = vxpose.xlu0.b32.cont [2/16] %v509, 128
        %1172 = vxpose.xlu0.b32.cont [3/16] 0.0, 128
        %1173 = vxpose.xlu0.b32.cont [4/16] 0.0, 128
        %1174 = vxpose.xlu0.b32.cont [5/16] 0.0, 128
        %1175 = vxpose.xlu0.b32.cont [6/16] 0.0, 128
        %1176 = vxpose.xlu0.b32.cont [7/16] 0.0, 128
        %1177 = vxpose.xlu0.b32.cont [8/16] 0.0, 128
        %1178 = vxpose.xlu0.b32.cont [9/16] 0.0, 128
        %1179 = vxpose.xlu0.b32.cont [10/16] 0.0, 128
        %1180 = vxpose.xlu0.b32.cont [11/16] 0.0, 128
        %1181 = vxpose.xlu0.b32.cont [12/16] 0.0, 128
        %1182 = vxpose.xlu0.b32.cont [13/16] 0.0, 128
        %1183 = vxpose.xlu0.b32.cont [14/16] 0.0, 128
        %1184 = vxpose.xlu0.b32.cont [15/16] 0.0, 128
        %1185 = vxpose.xlu0.b32.end [16/16] 0.0, 128
        %v1186 = vpop.trf.xlu0
        %v1187 = vpop.trf.xlu0
        %v1188 = vpop.trf.xlu0
        %v1189 = vpop.trf.xlu0
        %v1190 = vpop.trf.xlu0
        %v1191 = vpop.trf.xlu0
        %v1192 = vpop.trf.xlu0
        %v1193 = vpop.trf.xlu0
        %v1194 = vpop.trf.xlu0
        %v1195 = vpop.trf.xlu0
        %v1196 = vpop.trf.xlu0
        %v1197 = vpop.trf.xlu0
        %v1198 = vpop.trf.xlu0
        %v1199 = vpop.trf.xlu0
        %v1200 = vpop.trf.xlu0
        %v1201 = vpop.trf.xlu0
        %v1203 = vsel %vm608, %v1186, 0
        %v1206 = vsel %vm608, %v1187, 0
        %1208 = vmatprep.subr.mxu0 0.0
        %1209 = vmatpush1.msra.mxu0 %v999
        %1210 = vmatprep.subr.mxu0 0.0
        %1211 = vmatpush1.msra.mxu0 %v1000
        %1212 = vmatprep.subr.mxu0 0.0
        %1213 = vmatpush1.msra.mxu0 0.0
        %1214 = vmatprep.subr.mxu0 0.0
        %1215 = vmatpush1.msra.mxu0 0.0
        %1216 = vmatprep.subr.mxu0 0.0
        %1217 = vmatpush1.msra.mxu0 0.0
        %1218 = vmatprep.subr.mxu0 0.0
        %1219 = vmatpush1.msra.mxu0 0.0
        %1220 = vmatprep.subr.mxu0 0.0
        %1221 = vmatpush1.msra.mxu0 0.0
        %1222 = vmatprep.subr.mxu0 0.0
        %1223 = vmatpush1.msra.mxu0 0.0
        %1224 = vmatprep.subr.mxu0 0.0
        %1225 = vmatpush1.msra.mxu0 0.0
        %1226 = vmatprep.subr.mxu0 0.0
        %1227 = vmatpush1.msra.mxu0 0.0
        %1228 = vmatprep.subr.mxu0 0.0
        %1229 = vmatpush1.msra.mxu0 0.0
        %1230 = vmatprep.subr.mxu0 0.0
        %1231 = vmatpush1.msra.mxu0 0.0
        %1232 = vmatprep.subr.mxu0 0.0
        %1233 = vmatpush1.msra.mxu0 0.0
        %1234 = vmatprep.subr.mxu0 0.0
        %1235 = vmatpush1.msra.mxu0 0.0
        %1236 = vmatprep.subr.mxu0 0.0
        %1237 = vmatpush1.msra.mxu0 0.0
        %1238 = vmatprep.subr.mxu0 0.0
        %1239 = vmatpush1.msra.mxu0 0.0
        %1240 = vmatprep.subr.mxu0 0.0
        %1241 = vmatpush1.msra.mxu0 0.0
        %1242 = vmatprep.subr.mxu0 0.0
        %1243 = vmatpush1.msra.mxu0 0.0
        %1244 = vmatprep.subr.mxu0 0.0
        %1245 = vmatpush1.msra.mxu0 0.0
        %1246 = vmatprep.subr.mxu0 0.0
        %1247 = vmatpush1.msra.mxu0 0.0
        %1248 = vmatprep.subr.mxu0 0.0
        %1249 = vmatpush1.msra.mxu0 0.0
        %1250 = vmatprep.subr.mxu0 0.0
        %1251 = vmatpush1.msra.mxu0 0.0
        %1252 = vmatprep.subr.mxu0 0.0
        %1253 = vmatpush1.msra.mxu0 0.0
        %1254 = vmatprep.subr.mxu0 0.0
        %1255 = vmatpush1.msra.mxu0 0.0
        %1256 = vmatprep.subr.mxu0 0.0
        %1257 = vmatpush1.msra.mxu0 0.0
        %1258 = vmatprep.subr.mxu0 0.0
        %1259 = vmatpush1.msra.mxu0 0.0
        %1260 = vmatprep.subr.mxu0 0.0
        %1261 = vmatpush1.msra.mxu0 0.0
        %1262 = vmatprep.subr.mxu0 0.0
        %1263 = vmatpush1.msra.mxu0 0.0
        %1264 = vmatprep.subr.mxu0 0.0
        %1265 = vmatpush1.msra.mxu0 0.0
        %1266 = vmatprep.subr.mxu0 0.0
        %1267 = vmatpush1.msra.mxu0 0.0
        %1268 = vmatprep.subr.mxu0 0.0
        %1269 = vmatpush1.msra.mxu0 0.0
        %1270 = vmatprep.subr.mxu0 0.0
        %1271 = vmatpush1.msra.mxu0 0.0
        %1272 = vmatprep.mubr.f32.mxu0 0.0
        %1273 = vmatmul.mubr.f32.gmra.mrb[0].mxu0 %v1203
        %v1274 = vpop.f32.mrb[0].mxu0
        %v1275 = vadd.f32 0.0, %v1274
        %v1276 = vpop.f32.mrb[0].mxu0
        %1277 = vmatprep.mubr.f32.mxu0 0.0
        %1278 = vmatmul.mubr.f32.gmra.mrb[0].mxu0 %v1206
        %v1279 = vpop.f32.mrb[0].mxu0
        %v1280 = vadd.f32 0.0, %v1279
        %v1281 = vpop.f32.mrb[0].mxu0
        %1282 = vdwg.mxu0
        %1283 = vst.msk [vmem:[%s462] sm:$0xff] %vm775, %v1162
        %1284 = vst.msk [vmem:[%s462 + $0x8] sm:$0xff] %vm775, %v1167
        %1285 = vst.msk [vmem:[%s462 + $0x10] sm:$0xff] %vm775, %v1275
        %1286 = vst.msk [vmem:[%s462 + $0x18] sm:$0xff] %vm775, %v1280
        %v1287 = vsub.f32 %v590, %v1162
        %v1288 = vsub.f32 %v595, %v1167
        %v1289 = vsub.f32 %v600, %v1275
        %v1290 = vsub.f32 %v605, %v1280
        %1291 = vst.msk [vmem:[%s469] sm:$0xff] %vm775, %v1287
        %1292 = vst.msk [vmem:[%s469 + $0x8] sm:$0xff] %vm775, %v1288
        %1293 = vst.msk [vmem:[%s469 + $0x10] sm:$0xff] %vm775, %v1289
        %1294 = vst.msk [vmem:[%s469 + $0x18] sm:$0xff] %vm775, %v1290
        %s1295 = sand.u32 %s181, 1
        %s1296 = scalar_lea.sflag [#allocation4], %s1295
        %s1297 = sand.u32 %s181, 1
        %s1298 = smul.addr %s1297, 32
        %s1299 = scalar_lea.vmem [#allocation11], %s1298
        %s1300 = sand.u32 %s33, 1
        %s1301 = scalar_lea.sflag [#allocation13], %s1300
        %s1302 = sand.u32 %s209, 1
        %s1303 = smul.addr %s1302, 32
        %s1304 = scalar_lea.vmem [#allocation12], %s1303
        %s1305 = sand.u32 %s33, 1
        %s1306 = scalar_lea.sflag [#allocation13], %s1305
        %s1307 = sand.u32 %s237, 1
        %s1308 = smul.addr %s1307, 2
        %s1309 = scalar_lea.vmem [#allocation14], %s1308
        %s1310 = smul.u32 8, %s38
        %p1311 = scmp.lt.s32.totalorder %s37, 1
        %s1312 = scalar_select %p1311, %s37, 1
        %p1313 = scmp.lt.s32.totalorder %s1310, 7
        %s1314 = scalar_select %p1313, %s1310, 7
        %s1315 = smul.addr %s1312, 16
        %s1316 = sadd.s32 %s1314, %s1315
        %s1317 = smul.addr %s1316, 8
        %s1318 = scalar_lea.vmem %s8, %s1317
        // Predicated region
        $region61: #{tpu_custom_call.1} parent=39 // pred_check
          %p1319 = pneg %p191
        $region62: #{tpu_custom_call.1} parent=39 // pred_check_branch
          %1321 = sbr.rel (%p1319) target = $region64
        $region63: #{tpu_custom_call.1} parent=39 // pred_region
          %s1323 = ssub.s32 512, 512
          %1324 = vsyncadd %s1296, %s1323
          %s1325 = smul.addr %s37, 4
          %s1326 = sadd.s32 %s38, %s1325
          %s1327 = smul.addr %s1326, 128
          %s1328 = scalar_lea.hbm %s5, %s1327
          %s1329 = sshll.u32 %s1299, 4
          %s1330 = int_to_ptr.vmem [resolvable:$true] %s1329
          %1335 = dma.vmem_to_hbm [thread:$0]  %s1330, 512, %s1328, %s1296, 128, 128, 8
        $region64: #{tpu_custom_call.1} parent=39 // pred_fallthru
          _
        // Predicated region
        $region65: #{tpu_custom_call.1} parent=39 // pred_check
          %p1336 = pneg %p219
        $region66: #{tpu_custom_call.1} parent=39 // pred_check_branch
          %1338 = sbr.rel (%p1336) target = $region68
        $region67: #{tpu_custom_call.1} parent=39 // pred_region
          %s1340 = ssub.s32 512, 512
          %1341 = vsyncadd %s1301, %s1340
          %s1342 = smul.addr %s37, 4
          %s1343 = sadd.s32 %s38, %s1342
          %s1344 = smul.addr %s1343, 128
          %s1345 = scalar_lea.hbm %s6, %s1344
          %s1346 = sshll.u32 %s1304, 4
          %s1347 = int_to_ptr.vmem [resolvable:$true] %s1346
          %1352 = dma.vmem_to_hbm [thread:$0]  %s1347, 512, %s1345, %s1301, 128, 128, 8
        $region68: #{tpu_custom_call.1} parent=39 // pred_fallthru
          _
        // Predicated region
        $region69: #{tpu_custom_call.1} parent=39 // pred_check
          %p1353 = pneg %p247
        $region70: #{tpu_custom_call.1} parent=39 // pred_check_branch
          %1355 = sbr.rel (%p1353) target = $region72
        $region71: #{tpu_custom_call.1} parent=39 // pred_region
          %s1357 = ssub.s32 32, 32
          %1358 = vsyncadd %s1306, %s1357
          %s1359 = sadd.s32 %s38, %s37
          %s1360 = smul.addr %s1359, 32
          %s1361 = scalar_lea.hbm %s7, %s1360
          %s1363 = sshll.u32 %s1309, 4
          %s1364 = int_to_ptr.vmem [resolvable:$true] %s1363
          %1366 = dma.vmem_to_hbm [thread:$0]  %s1364, 32, %s1361, %s1306
        $region72: #{tpu_custom_call.1} parent=39 // pred_fallthru
          _
        // Predicated region
        $region73: #{tpu_custom_call.1} parent=39 // pred_check
          %p1367 = pneg %p275
        $region74: #{tpu_custom_call.1} parent=39 // pred_check_branch
          %1369 = sbr.rel (%p1367) target = $region76
        $region75: #{tpu_custom_call.1} parent=39 // pred_region
          %s1370 = smul.u32 8, %s38
        $region76: #{tpu_custom_call.1} parent=39 // pred_fallthru
          _
      $region40: #{tpu_custom_call.1} parent=5 // pred_fallthru
        _
      %p1371 = scmp.le.s32.totalorder 2, %s28
      // Predicated region
      $region77: #{tpu_custom_call.1} parent=5 // pred_check
        %p1372 = pneg %p1371
      $region78: #{tpu_custom_call.1} parent=5 // pred_check_branch
        %1374 = sbr.rel (%p1372) target = $region80
      $region79: #{tpu_custom_call.1} parent=5 // pred_region
        %s1375 = ssub.s32 %s28, 2
        // Predicated region
        $region81: #{tpu_custom_call.1} parent=79 // pred_check
          %p1376 = pneg %p197
        $region82: #{tpu_custom_call.1} parent=79 // pred_check_branch
          %1378 = sbr.rel (%p1376) target = $region84
        $region83: #{tpu_custom_call.1} parent=79 // pred_region
          %s1379 = sand.u32 %s182, 1
          %s1380 = scalar_lea.sflag [#allocation4], %s1379
          %s1381 = sand.u32 %s182, 1
          %s1382 = smul.addr %s1381, 32
          %s1383 = scalar_lea.vmem [#allocation11], %s1382
          %1384 = dma.done %s1380, 512
        $region84: #{tpu_custom_call.1} parent=79 // pred_fallthru
          _
        // Predicated region
        $region85: #{tpu_custom_call.1} parent=79 // pred_check
          %p1385 = pneg %p225
        $region86: #{tpu_custom_call.1} parent=79 // pred_check_branch
          %1387 = sbr.rel (%p1385) target = $region88
        $region87: #{tpu_custom_call.1} parent=79 // pred_region
          %s1388 = sand.u32 %s34, 1
          %s1389 = scalar_lea.sflag [#allocation13], %s1388
          %s1390 = sand.u32 %s210, 1
          %s1391 = smul.addr %s1390, 32
          %s1392 = scalar_lea.vmem [#allocation12], %s1391
          %1393 = dma.done %s1389, 512
        $region88: #{tpu_custom_call.1} parent=79 // pred_fallthru
          _
        // Predicated region
        $region89: #{tpu_custom_call.1} parent=79 // pred_check
          %p1394 = pneg %p253
        $region90: #{tpu_custom_call.1} parent=79 // pred_check_branch
          %1396 = sbr.rel (%p1394) target = $region92
        $region91: #{tpu_custom_call.1} parent=79 // pred_region
          %s1397 = sand.u32 %s34, 1
          %s1398 = scalar_lea.sflag [#allocation13], %s1397
          %s1399 = sand.u32 %s238, 1
          %s1400 = smul.addr %s1399, 2
          %s1401 = scalar_lea.vmem [#allocation14], %s1400
          %1402 = dma.done %s1398, 32
        $region92: #{tpu_custom_call.1} parent=79 // pred_fallthru
          _
        // Predicated region
        $region93: #{tpu_custom_call.1} parent=79 // pred_check
          %p1403 = pneg %p281
        $region94: #{tpu_custom_call.1} parent=79 // pred_check_branch
          %1405 = sbr.rel (%p1403) target = $region96
        $region95: #{tpu_custom_call.1} parent=79 // pred_region
          %s1406 = smul.u32 8, %s40
          %p1407 = scmp.lt.s32.totalorder %s39, 1
          %s1408 = scalar_select %p1407, %s39, 1
          %p1409 = scmp.lt.s32.totalorder %s1406, 7
          %s1410 = scalar_select %p1409, %s1406, 7
          %s1411 = smul.addr %s1408, 16
          %s1412 = sadd.s32 %s1410, %s1411
          %s1413 = smul.addr %s1412, 8
          %s1414 = scalar_lea.vmem %s8, %s1413
        $region96: #{tpu_custom_call.1} parent=79 // pred_fallthru
          _
      $region80: #{tpu_custom_call.1} parent=5 // pred_fallthru
        _
    $region6: #{tpu_custom_call.1} parent=1 // loop_footer
      %s32 = sadd.s32 1, %s28
    $region7: #{tpu_custom_call.1} parent=1 // loop_footer_branch
      %27 = sbr.rel target = $region3
    $region8: #{tpu_custom_call.1} parent=1 // loop_exit
      _
    %1415 = vsyncpa [#allocation3], 1
    %s1416 = scalar_lea.sflag [#allocation3], 1
    %1417 = vsyncpa %s1416, 1
    %1418 = vsyncpa [#allocation6], 1
    %1419 = vsyncpa [#allocation9], 1
    %s1420 = scalar_lea.sflag [#allocation9], 1
    %1421 = vsyncpa %s1420, 1
    %1422 = vsyncpa [#allocation4], 1
    %s1423 = scalar_lea.sflag [#allocation4], 1
    %1424 = vsyncpa %s1423, 1
    %1425 = vsyncpa [#allocation13], 1
    %s1426 = scalar_lea.sflag [#allocation13], 1
    %1427 = vsyncpa %s1426, 1

</llo_original>
